<compile_context>
chip_gen: v5e
topology: v5e:2x2
jax: 0.10.0
libtpu: 0.0.40
codegen_flags: <defaults>
</compile_context>

<pallas_src>
import functools

import numpy as np
import jax
import jax.numpy as jnp
from jax.experimental import pallas as pl
from jax.experimental.pallas import tpu as pltpu

POOLS = (2, 3, 5, 6)        # MaxPool1d kernel_size == stride for pool1..pool4
_NPOOL = len(POOLS)
_LANE = 128


def _pool_meta(t, tp):
    """Per pool: (k, t_k, n_chunks, seg_cols, seg_offset) plus K_tot and the width
    of the dense-z staging scratch."""
    meta = []
    off = 0
    for k in POOLS:
        t_k = t // k                         # MaxPool1d(k, k) output length (floor)
        n_chunks = -(-t_k // _LANE)          # ceil(t_k / 128)
        seg = n_chunks * _LANE               # 128-aligned segment in LHS / stacked U
        meta.append((k, t_k, n_chunks, seg, off))
        off += seg
    k_tot = off
    tz = tp
    for (k, _, n_chunks, _, _) in meta:
        tz = max(tz, _LANE * k * n_chunks)   # widest chunked read of the dense z row
    return meta, k_tot, tz


def _build_u_stacked(t, tp, meta, k_tot):
    """(K_tot, Tp): vertically stacked, row-compressed align_corners interp matrices.
    Row (off_p + j) holds the interpolation weights of MaxPool output j of pool p;
    rows j >= t_k and columns >= T are zero (segment / lane padding)."""
    u = np.zeros((k_tot, tp), np.float32)
    cols = np.arange(t)
    for (k, t_k, _, _, off) in meta:
        if t_k == 1:
            u[off, :t] = 1.0
            continue
        src = cols.astype(np.float64) * (t_k - 1) / (t - 1)
        i0 = np.clip(np.floor(src).astype(np.int64), 0, t_k - 2)
        frac = (src - i0).astype(np.float32)
        u[off + i0, cols] += 1.0 - frac
        u[off + i0 + 1, cols] += frac
    return u


def _build_select(k):
    """(128k, 128) constant 0/1 matrix: column i selects input lane i*k.  Applied to
    a contiguous 128k-wide slice of the dense window-max row it yields the stride-k
    (valid MaxPool start) samples for one 128-wide output chunk."""
    q = np.zeros((_LANE * k, _LANE), np.float32)
    idx = np.arange(_LANE)
    q[idx * k, idx] = 1.0
    return q


def _tpp_kernel(x_ref, w_ref, b_ref, q2_ref, q3_ref, q5_ref, q6_ref, u_ref,
                out_ref, zd_ref, lhs_ref, *, meta, tp, nb):
    q_refs = (q2_ref, q3_ref, q5_ref, q6_ref)
    w = w_ref[...]                                            # (C, 1) conv weight
    bias = b_ref[0]                                           # conv bias (SMEM scalar)
    row_ids = jax.lax.broadcasted_iota(jnp.int32, (8, 1), 0)

    # Clear the dense-z staging scratch so never-written tail lanes can't leak
    # NaN/Inf garbage into the (zero-weighted) padded rows of the stacked matmul.
    zd_ref[...] = jnp.zeros(zd_ref.shape, zd_ref.dtype)

    for it in range(nb):                                      # items per grid step
        x_it = x_ref[it]                                      # (C, Tp), loaded once
        m = x_it
        win = 1
        for p, (k, t_k, n_chunks, seg, off) in enumerate(meta):
            # Extend the shared running window max to width k via lane rolls (XLU).
            for o in range(win, k):
                m = jnp.maximum(m, pltpu.roll(x_it, shift=tp - o, axis=1))
            win = k
            # Conv1d(C -> 1, kernel 1): implicit (C,1) broadcast + channel reduction.
            zd = jnp.sum(m * w, axis=0, keepdims=True) + bias  # (1, Tp), dense starts
            zd_ref[p:p + 1, 0:tp] = zd
            # Stride-k compaction onto this pool's 128-aligned LHS segment: one tiny
            # constant matmul per 128-wide output chunk.  Rows != p are masked to 0,
            # so the stacked LHS stays block structured without any pre-zeroing.
            qp = q_refs[p][...]                                # (128k, 128)
            mask = row_ids == p
            for c in range(n_chunks):
                blk = zd_ref[:, _LANE * k * c:_LANE * k * (c + 1)]    # (8, 128k)
                blk = jnp.where(mask, blk, 0.0)
                sel = jnp.dot(blk, qp, preferred_element_type=jnp.float32)  # (8, 128)
                lhs_ref[:, off + _LANE * c:off + _LANE * (c + 1)] = sel
        # One stacked matmul for all four pools: rows 0..3 = layers, rows 4..7 = 0.
        layers8 = jnp.dot(lhs_ref[...], u_ref[...],
                          preferred_element_type=jnp.float32)          # (8, Tp)
        out_ref[it, 0:8, :] = layers8.astype(out_ref.dtype)   # aligned dense store
        out_ref[it, 8:, :] = x_it.astype(out_ref.dtype)       # aligned passthrough


def _pick_items_per_step(n, c, tp):
    """Amortize per-grid-step overhead for small items, but keep >= 2 grid steps
    when N >= 2 (v7x has 2 TensorCores) and keep x+out blocks modest in VMEM."""
    per_item_bytes = (2 * c + 8) * tp * 4
    cap = max(1, min(8, (2 * 1024 * 1024) // max(per_item_bytes, 1)))
    if n >= 2:
        cap = max(1, min(cap, n // 2))
    nb = 1
    for d in range(1, int(cap) + 1):
        if n % d == 0:
            nb = d
    return nb


def tpp_block(x, w, b):
    """x: (N, C, T) f32, w: (C,) Conv1d(C->1,1) weight, b: () bias -> (N, C+4, T)."""
    n, c, t = x.shape
    if t < max(POOLS):
        raise ValueError(f"TPPblock needs T >= {max(POOLS)}, got T={t}")

    tp = -(-t // _LANE) * _LANE                 # lane-dense (multiple of 128) time
    meta, k_tot, tz = _pool_meta(t, tp)
    nb = _pick_items_per_step(n, c, tp)
    grid = (n // nb,)

    x32 = x.astype(jnp.float32)
    x_pad = x32 if tp == t else jnp.pad(x32, ((0, 0), (0, 0), (0, tp - t)))
    w_col = jnp.reshape(w, (c, 1)).astype(jnp.float32)
    b1 = jnp.reshape(b, (1,)).astype(jnp.float32)
    q_mats = [jnp.asarray(_build_select(k)) for k in POOLS]
    u_stacked = jnp.asarray(_build_u_stacked(t, tp, meta, k_tot))

    const = pl.Buffered(1)                      # grid-invariant: single-buffered
    in_specs = [
        pl.BlockSpec((nb, c, tp), lambda i: (i, 0, 0)),
        pl.BlockSpec((c, 1), lambda i: (0, 0), pipeline_mode=const),
        pl.BlockSpec(memory_space=pltpu.MemorySpace.SMEM),
        *[pl.BlockSpec(q.shape, lambda i: (0, 0), pipeline_mode=const)
          for q in q_mats],
        pl.BlockSpec((k_tot, tp), lambda i: (0, 0), pipeline_mode=const),
    ]
    out_specs = pl.BlockSpec((nb, c + 8, tp), lambda i: (i, 0, 0))

    vmem_need = (2 * nb * c * tp * 4 + 2 * nb * (c + 8) * tp * 4   # x/out, 2 buffers
                 + k_tot * tp * 4                                  # stacked U (x1)
                 + sum(int(q.size) for q in q_mats) * 4 + c * 4    # select mats, w
                 + 8 * tz * 4 + 8 * k_tot * 4)                     # scratches
    vmem_limit = int(min(64 * 2 ** 20, max(32 * 2 ** 20, 2 * vmem_need)))

    kernel = functools.partial(_tpp_kernel, meta=meta, tp=tp, nb=nb)
    y = pl.pallas_call(
        kernel,
        out_shape=jax.ShapeDtypeStruct((n, c + 8, tp), jnp.float32),
        grid_spec=pltpu.PrefetchScalarGridSpec(
            num_scalar_prefetch=0,
            grid=grid,
            in_specs=in_specs,
            out_specs=out_specs,
            scratch_shapes=[
                pltpu.VMEM((8, tz), jnp.float32),     # dense window-max z rows
                pltpu.VMEM((8, k_tot), jnp.float32),  # block-structured stacked LHS
            ]),
        compiler_params=pltpu.CompilerParams(
            dimension_semantics=("parallel",),
            vmem_limit_bytes=vmem_limit),
    )(x_pad, w_col, b1, *q_mats, u_stacked)

    # Drop the 4 zero padding rows (4..7) and the padded time lanes.
    out = jnp.concatenate([y[:, :_NPOOL, :t], y[:, 8:, :t]], axis=1)
    return out.astype(x.dtype)


def tpp_reference(x, w, b):
    """Pure-JAX reference replicating the PyTorch forward (MaxPool1d floor
    truncation + Conv1d(C->1,1) + F.upsample linear align_corners)."""
    n, c, t = x.shape
    outs = []
    for k in POOLS:
        t_k = t // k
        pooled = x[:, :, :t_k * k].reshape(n, c, t_k, k).max(axis=-1)
        z = jnp.einsum('nct,c->nt', pooled, w) + b
        if t_k == 1:
            up = jnp.broadcast_to(z, (n, t))
        else:
            src = np.arange(t, dtype=np.float64) * (t_k - 1) / (t - 1)
            i0 = np.clip(np.floor(src).astype(np.int64), 0, t_k - 2)
            frac = jnp.asarray((src - i0).astype(np.float32))
            up = z[:, i0] * (1.0 - frac) + z[:, i0 + 1] * frac
        outs.append(up[:, None, :])
    outs.append(x)
    return jnp.concatenate(outs, axis=1)


def _check(key, n, c, t, tol):
    kx, kw, kb = jax.random.split(key, 3)
    x = jax.random.normal(kx, (n, c, t), dtype=jnp.float32)
    w = jax.random.normal(kw, (c,), dtype=jnp.float32) * 0.5
    b = jax.random.normal(kb, (), dtype=jnp.float32) * 0.1
    out = jax.block_until_ready(tpp_block(x, w, b))
    ref = tpp_reference(x, w, b)
    assert out.shape == (n, c + _NPOOL, t), out.shape
    # Tolerance covers MXU default f32 precision (bf16 passes); structural/index
    # errors would show up as O(1) mismatches.
    np.testing.assert_allclose(np.asarray(out), np.asarray(ref), rtol=tol, atol=tol)


if __name__ == "__main__":
    key = jax.random.PRNGKey(0)
    k1, k2 = jax.random.split(key)
    # Small case from the module spec (all pool scales non-trivial).
    _check(k1, n=2, c=4, t=30, tol=2e-2)
    # Larger T exercises the multi-chunk stride compaction (T//2 > 128) and the
    # multiple-items-per-grid-step path.
    _check(k2, n=4, c=8, t=300, tol=2e-2)
    print("KERNEL_OK")
</pallas_src>

<mosaic_0001>
module attributes {stable_mosaic.version = 11 : i64} {
  func.func @_tpp_kernel(%arg0: i32, %arg1: memref<1x4x128xf32, #tpu.memory_space<vmem>>, %arg2: memref<4x1xf32, #tpu.memory_space<vmem>>, %arg3: memref<1xf32, #tpu.memory_space<smem>>, %arg4: memref<256x128xf32, #tpu.memory_space<vmem>>, %arg5: memref<384x128xf32, #tpu.memory_space<vmem>>, %arg6: memref<640x128xf32, #tpu.memory_space<vmem>>, %arg7: memref<768x128xf32, #tpu.memory_space<vmem>>, %arg8: memref<512x128xf32, #tpu.memory_space<vmem>>, %arg9: memref<1x12x128xf32, #tpu.memory_space<vmem>>, %arg10: memref<8x768xf32, #tpu.memory_space<vmem>>, %arg11: memref<8x512xf32, #tpu.memory_space<vmem>>) attributes {dimension_semantics = [#tpu.dimension_semantics<parallel>], iteration_bounds = array<i64: 2>, scalar_prefetch = 0 : i64, scratch_operands = 2 : i64, tpu.core_type = #tpu.core_type<tc>, window_params = [{transform_indices = @transform_0, window_bounds = array<i64: 1, 4, 128>}, {pipeline_mode = #tpu.pipeline_mode<synchronous>, transform_indices = @transform_1, window_bounds = array<i64: 4, 1>}, {transform_indices = @transform_2, window_bounds = array<i64: 1>}, {pipeline_mode = #tpu.pipeline_mode<synchronous>, transform_indices = @transform_3, window_bounds = array<i64: 256, 128>}, {pipeline_mode = #tpu.pipeline_mode<synchronous>, transform_indices = @transform_4, window_bounds = array<i64: 384, 128>}, {pipeline_mode = #tpu.pipeline_mode<synchronous>, transform_indices = @transform_5, window_bounds = array<i64: 640, 128>}, {pipeline_mode = #tpu.pipeline_mode<synchronous>, transform_indices = @transform_6, window_bounds = array<i64: 768, 128>}, {pipeline_mode = #tpu.pipeline_mode<synchronous>, transform_indices = @transform_7, window_bounds = array<i64: 512, 128>}, {transform_indices = @transform_8, window_bounds = array<i64: 1, 12, 128>}]} {
    %c0 = arith.constant 0 : index
    %c0_0 = arith.constant 0 : index
    %0 = vector.load %arg2[%c0, %c0_0] : memref<4x1xf32, #tpu.memory_space<vmem>>, vector<4x1xf32>
    %c0_1 = arith.constant 0 : index
    %1 = memref.load %arg3[%c0_1] : memref<1xf32, #tpu.memory_space<smem>>
    %2 = tpu.iota {dimensions = array<i32: 0>} : vector<8x1xi32>
    %cst = arith.constant 0.000000e+00 : f32
    %3 = vector.broadcast %cst : f32 to vector<8x768xf32>
    %c0_2 = arith.constant 0 : index
    %c0_3 = arith.constant 0 : index
    %4 = vector.load %arg10[%c0_2, %c0_3] : memref<8x768xf32, #tpu.memory_space<vmem>>, vector<8x768xf32>
    tpu.vector_store %arg10[%c0_2, %c0_3], %3 {strides = array<i32>} : memref<8x768xf32, #tpu.memory_space<vmem>>, vector<8x768xf32>,
    %c0_4 = arith.constant 0 : index
    %c0_5 = arith.constant 0 : index
    %c0_6 = arith.constant 0 : index
    %5 = vector.load %arg1[%c0_4, %c0_5, %c0_6] : memref<1x4x128xf32, #tpu.memory_space<vmem>>, vector<1x4x128xf32>
    %6 = vector.shape_cast %5 : vector<1x4x128xf32> to vector<4x128xf32>
    %c127_i32 = arith.constant 127 : i32
    %7 = tpu.dynamic_rotate %6 by %c127_i32 dim 1 : vector<4x128xf32>, i32 -> vector<4x128xf32>
    %8 = arith.maximumf %6, %7 : vector<4x128xf32>
    %9 = vector.broadcast %0 : vector<4x1xf32> to vector<4x128xf32>
    %10 = arith.mulf %8, %9 : vector<4x128xf32>
    %cst_7 = arith.constant dense<0.000000e+00> : vector<128xf32>
    %11 = vector.multi_reduction <add>, %10, %cst_7 [0] : vector<4x128xf32> to vector<128xf32>
    %12 = vector.shape_cast %11 : vector<128xf32> to vector<1x128xf32>
    %13 = vector.broadcast %1 : f32 to vector<1x128xf32>
    %14 = arith.addf %12, %13 : vector<1x128xf32>
    %c0_8 = arith.constant 0 : index
    %c0_9 = arith.constant 0 : index
    %15 = vector.load %arg10[%c0_8, %c0_9] : memref<8x768xf32, #tpu.memory_space<vmem>>, vector<1x128xf32>
    tpu.vector_store %arg10[%c0_8, %c0_9], %14 {strides = array<i32>} : memref<8x768xf32, #tpu.memory_space<vmem>>, vector<1x128xf32>,
    %c0_10 = arith.constant 0 : index
    %c0_11 = arith.constant 0 : index
    %16 = vector.load %arg4[%c0_10, %c0_11] : memref<256x128xf32, #tpu.memory_space<vmem>>, vector<256x128xf32>
    %c0_i32 = arith.constant 0 : i32
    %17 = vector.broadcast %c0_i32 : i32 to vector<8x1xi32>
    %18 = arith.cmpi eq, %2, %17 : vector<8x1xi32>
    %c0_12 = arith.constant 0 : index
    %c0_13 = arith.constant 0 : index
    %19 = vector.load %arg10[%c0_12, %c0_13] : memref<8x768xf32, #tpu.memory_space<vmem>>, vector<8x256xf32>
    %cst_14 = arith.constant 0.000000e+00 : f32
    %20 = vector.shape_cast %18 : vector<8x1xi1> to vector<8x1xi1>
    %21 = vector.broadcast %20 : vector<8x1xi1> to vector<8x256xi1>
    %22 = vector.broadcast %cst_14 : f32 to vector<8x256xf32>
    %23 = arith.select %21, %19, %22 : vector<8x256xi1>, vector<8x256xf32>
    %cst_15 = arith.constant dense<0.000000e+00> : vector<8x128xf32>
    %24 = tpu.matmul %23, %16, %cst_15 {dimension_numbers = #tpu.dot_dimension_numbers<[1], [0], [0], [1], [0, 0, 1, 1], [], []>} : vector<8x256xf32>, vector<256x128xf32>, vector<8x128xf32> -> vector<8x128xf32>
    %c0_16 = arith.constant 0 : index
    %c0_17 = arith.constant 0 : index
    %25 = vector.load %arg11[%c0_16, %c0_17] : memref<8x512xf32, #tpu.memory_space<vmem>>, vector<8x128xf32>
    tpu.vector_store %arg11[%c0_16, %c0_17], %24 {strides = array<i32>} : memref<8x512xf32, #tpu.memory_space<vmem>>, vector<8x128xf32>,
    %c126_i32 = arith.constant 126 : i32
    %26 = tpu.dynamic_rotate %6 by %c126_i32 dim 1 : vector<4x128xf32>, i32 -> vector<4x128xf32>
    %27 = arith.maximumf %8, %26 : vector<4x128xf32>
    %28 = vector.broadcast %0 : vector<4x1xf32> to vector<4x128xf32>
    %29 = arith.mulf %27, %28 : vector<4x128xf32>
    %cst_18 = arith.constant dense<0.000000e+00> : vector<128xf32>
    %30 = vector.multi_reduction <add>, %29, %cst_18 [0] : vector<4x128xf32> to vector<128xf32>
    %31 = vector.shape_cast %30 : vector<128xf32> to vector<1x128xf32>
    %32 = vector.broadcast %1 : f32 to vector<1x128xf32>
    %33 = arith.addf %31, %32 : vector<1x128xf32>
    %c1 = arith.constant 1 : index
    %c0_19 = arith.constant 0 : index
    %34 = vector.load %arg10[%c1, %c0_19] : memref<8x768xf32, #tpu.memory_space<vmem>>, vector<1x128xf32>
    tpu.vector_store %arg10[%c1, %c0_19], %33 {strides = array<i32>} : memref<8x768xf32, #tpu.memory_space<vmem>>, vector<1x128xf32>,
    %c0_20 = arith.constant 0 : index
    %c0_21 = arith.constant 0 : index
    %35 = vector.load %arg5[%c0_20, %c0_21] : memref<384x128xf32, #tpu.memory_space<vmem>>, vector<384x128xf32>
    %c1_i32 = arith.constant 1 : i32
    %36 = vector.broadcast %c1_i32 : i32 to vector<8x1xi32>
    %37 = arith.cmpi eq, %2, %36 : vector<8x1xi32>
    %c0_22 = arith.constant 0 : index
    %c0_23 = arith.constant 0 : index
    %38 = vector.load %arg10[%c0_22, %c0_23] : memref<8x768xf32, #tpu.memory_space<vmem>>, vector<8x384xf32>
    %cst_24 = arith.constant 0.000000e+00 : f32
    %39 = vector.shape_cast %37 : vector<8x1xi1> to vector<8x1xi1>
    %40 = vector.broadcast %39 : vector<8x1xi1> to vector<8x384xi1>
    %41 = vector.broadcast %cst_24 : f32 to vector<8x384xf32>
    %42 = arith.select %40, %38, %41 : vector<8x384xi1>, vector<8x384xf32>
    %cst_25 = arith.constant dense<0.000000e+00> : vector<8x128xf32>
    %43 = tpu.matmul %42, %35, %cst_25 {dimension_numbers = #tpu.dot_dimension_numbers<[1], [0], [0], [1], [0, 0, 1, 1], [], []>} : vector<8x384xf32>, vector<384x128xf32>, vector<8x128xf32> -> vector<8x128xf32>
    %c0_26 = arith.constant 0 : index
    %c128 = arith.constant 128 : index
    %44 = vector.load %arg11[%c0_26, %c128] : memref<8x512xf32, #tpu.memory_space<vmem>>, vector<8x128xf32>
    tpu.vector_store %arg11[%c0_26, %c128], %43 {strides = array<i32>} : memref<8x512xf32, #tpu.memory_space<vmem>>, vector<8x128xf32>,
    %c125_i32 = arith.constant 125 : i32
    %45 = tpu.dynamic_rotate %6 by %c125_i32 dim 1 : vector<4x128xf32>, i32 -> vector<4x128xf32>
    %46 = arith.maximumf %27, %45 : vector<4x128xf32>
    %c124_i32 = arith.constant 124 : i32
    %47 = tpu.dynamic_rotate %6 by %c124_i32 dim 1 : vector<4x128xf32>, i32 -> vector<4x128xf32>
    %48 = arith.maximumf %46, %47 : vector<4x128xf32>
    %49 = vector.broadcast %0 : vector<4x1xf32> to vector<4x128xf32>
    %50 = arith.mulf %48, %49 : vector<4x128xf32>
    %cst_27 = arith.constant dense<0.000000e+00> : vector<128xf32>
    %51 = vector.multi_reduction <add>, %50, %cst_27 [0] : vector<4x128xf32> to vector<128xf32>
    %52 = vector.shape_cast %51 : vector<128xf32> to vector<1x128xf32>
    %53 = vector.broadcast %1 : f32 to vector<1x128xf32>
    %54 = arith.addf %52, %53 : vector<1x128xf32>
    %c2 = arith.constant 2 : index
    %c0_28 = arith.constant 0 : index
    %55 = vector.load %arg10[%c2, %c0_28] : memref<8x768xf32, #tpu.memory_space<vmem>>, vector<1x128xf32>
    tpu.vector_store %arg10[%c2, %c0_28], %54 {strides = array<i32>} : memref<8x768xf32, #tpu.memory_space<vmem>>, vector<1x128xf32>,
    %c0_29 = arith.constant 0 : index
    %c0_30 = arith.constant 0 : index
    %56 = vector.load %arg6[%c0_29, %c0_30] : memref<640x128xf32, #tpu.memory_space<vmem>>, vector<640x128xf32>
    %c2_i32 = arith.constant 2 : i32
    %57 = vector.broadcast %c2_i32 : i32 to vector<8x1xi32>
    %58 = arith.cmpi eq, %2, %57 : vector<8x1xi32>
    %c0_31 = arith.constant 0 : index
    %c0_32 = arith.constant 0 : index
    %59 = vector.load %arg10[%c0_31, %c0_32] : memref<8x768xf32, #tpu.memory_space<vmem>>, vector<8x640xf32>
    %cst_33 = arith.constant 0.000000e+00 : f32
    %60 = vector.shape_cast %58 : vector<8x1xi1> to vector<8x1xi1>
    %61 = vector.broadcast %60 : vector<8x1xi1> to vector<8x640xi1>
    %62 = vector.broadcast %cst_33 : f32 to vector<8x640xf32>
    %63 = arith.select %61, %59, %62 : vector<8x640xi1>, vector<8x640xf32>
    %cst_34 = arith.constant dense<0.000000e+00> : vector<8x128xf32>
    %64 = tpu.matmul %63, %56, %cst_34 {dimension_numbers = #tpu.dot_dimension_numbers<[1], [0], [0], [1], [0, 0, 1, 1], [], []>} : vector<8x640xf32>, vector<640x128xf32>, vector<8x128xf32> -> vector<8x128xf32>
    %c0_35 = arith.constant 0 : index
    %c256 = arith.constant 256 : index
    %65 = vector.load %arg11[%c0_35, %c256] : memref<8x512xf32, #tpu.memory_space<vmem>>, vector<8x128xf32>
    tpu.vector_store %arg11[%c0_35, %c256], %64 {strides = array<i32>} : memref<8x512xf32, #tpu.memory_space<vmem>>, vector<8x128xf32>,
    %c123_i32 = arith.constant 123 : i32
    %66 = tpu.dynamic_rotate %6 by %c123_i32 dim 1 : vector<4x128xf32>, i32 -> vector<4x128xf32>
    %67 = arith.maximumf %48, %66 : vector<4x128xf32>
    %68 = vector.broadcast %0 : vector<4x1xf32> to vector<4x128xf32>
    %69 = arith.mulf %67, %68 : vector<4x128xf32>
    %cst_36 = arith.constant dense<0.000000e+00> : vector<128xf32>
    %70 = vector.multi_reduction <add>, %69, %cst_36 [0] : vector<4x128xf32> to vector<128xf32>
    %71 = vector.shape_cast %70 : vector<128xf32> to vector<1x128xf32>
    %72 = vector.broadcast %1 : f32 to vector<1x128xf32>
    %73 = arith.addf %71, %72 : vector<1x128xf32>
    %c3 = arith.constant 3 : index
    %c0_37 = arith.constant 0 : index
    %74 = vector.load %arg10[%c3, %c0_37] : memref<8x768xf32, #tpu.memory_space<vmem>>, vector<1x128xf32>
    tpu.vector_store %arg10[%c3, %c0_37], %73 {strides = array<i32>} : memref<8x768xf32, #tpu.memory_space<vmem>>, vector<1x128xf32>,
    %c0_38 = arith.constant 0 : index
    %c0_39 = arith.constant 0 : index
    %75 = vector.load %arg7[%c0_38, %c0_39] : memref<768x128xf32, #tpu.memory_space<vmem>>, vector<768x128xf32>
    %c3_i32 = arith.constant 3 : i32
    %76 = vector.broadcast %c3_i32 : i32 to vector<8x1xi32>
    %77 = arith.cmpi eq, %2, %76 : vector<8x1xi32>
    %c0_40 = arith.constant 0 : index
    %c0_41 = arith.constant 0 : index
    %78 = vector.load %arg10[%c0_40, %c0_41] : memref<8x768xf32, #tpu.memory_space<vmem>>, vector<8x768xf32>
    %cst_42 = arith.constant 0.000000e+00 : f32
    %79 = vector.shape_cast %77 : vector<8x1xi1> to vector<8x1xi1>
    %80 = vector.broadcast %79 : vector<8x1xi1> to vector<8x768xi1>
    %81 = vector.broadcast %cst_42 : f32 to vector<8x768xf32>
    %82 = arith.select %80, %78, %81 : vector<8x768xi1>, vector<8x768xf32>
    %cst_43 = arith.constant dense<0.000000e+00> : vector<8x128xf32>
    %83 = tpu.matmul %82, %75, %cst_43 {dimension_numbers = #tpu.dot_dimension_numbers<[1], [0], [0], [1], [0, 0, 1, 1], [], []>} : vector<8x768xf32>, vector<768x128xf32>, vector<8x128xf32> -> vector<8x128xf32>
    %c0_44 = arith.constant 0 : index
    %c384 = arith.constant 384 : index
    %84 = vector.load %arg11[%c0_44, %c384] : memref<8x512xf32, #tpu.memory_space<vmem>>, vector<8x128xf32>
    tpu.vector_store %arg11[%c0_44, %c384], %83 {strides = array<i32>} : memref<8x512xf32, #tpu.memory_space<vmem>>, vector<8x128xf32>,
    %c0_45 = arith.constant 0 : index
    %c0_46 = arith.constant 0 : index
    %85 = vector.load %arg11[%c0_45, %c0_46] : memref<8x512xf32, #tpu.memory_space<vmem>>, vector<8x512xf32>
    %c0_47 = arith.constant 0 : index
    %c0_48 = arith.constant 0 : index
    %86 = vector.load %arg8[%c0_47, %c0_48] : memref<512x128xf32, #tpu.memory_space<vmem>>, vector<512x128xf32>
    %cst_49 = arith.constant dense<0.000000e+00> : vector<8x128xf32>
    %87 = tpu.matmul %85, %86, %cst_49 {dimension_numbers = #tpu.dot_dimension_numbers<[1], [0], [0], [1], [0, 0, 1, 1], [], []>} : vector<8x512xf32>, vector<512x128xf32>, vector<8x128xf32> -> vector<8x128xf32>
    %c0_50 = arith.constant 0 : index
    %c0_51 = arith.constant 0 : index
    %c0_52 = arith.constant 0 : index
    %88 = vector.load %arg9[%c0_50, %c0_51, %c0_52] : memref<1x12x128xf32, #tpu.memory_space<vmem>>, vector<1x8x128xf32>
    %89 = vector.shape_cast %88 : vector<1x8x128xf32> to vector<8x128xf32>
    %90 = vector.shape_cast %87 : vector<8x128xf32> to vector<1x8x128xf32>
    tpu.vector_store %arg9[%c0_50, %c0_51, %c0_52], %90 {strides = array<i32>} : memref<1x12x128xf32, #tpu.memory_space<vmem>>, vector<1x8x128xf32>,
    %c0_53 = arith.constant 0 : index
    %c8 = arith.constant 8 : index
    %c0_54 = arith.constant 0 : index
    %91 = vector.load %arg9[%c0_53, %c8, %c0_54] : memref<1x12x128xf32, #tpu.memory_space<vmem>>, vector<1x4x128xf32>
    %92 = vector.shape_cast %91 : vector<1x4x128xf32> to vector<4x128xf32>
    %93 = vector.shape_cast %6 : vector<4x128xf32> to vector<1x4x128xf32>
    tpu.vector_store %arg9[%c0_53, %c8, %c0_54], %93 {strides = array<i32>} : memref<1x12x128xf32, #tpu.memory_space<vmem>>, vector<1x4x128xf32>,
    return
  }
  func.func @transform_0(%arg0: i32) -> (i32, i32, i32) {
    %c0_i32 = arith.constant 0 : i32
    %c0_i32_0 = arith.constant 0 : i32
    %c0_i32_1 = arith.constant 0 : i32
    return %arg0, %c0_i32, %c0_i32_0 : i32, i32, i32
  }
  func.func @transform_1(%arg0: i32) -> (i32, i32) {
    %c0_i32 = arith.constant 0 : i32
    %c0_i32_0 = arith.constant 0 : i32
    %c0_i32_1 = arith.constant 0 : i32
    return %c0_i32, %c0_i32_0 : i32, i32
  }
  func.func @transform_2(%arg0: i32) -> i32 {
    %c0_i32 = arith.constant 0 : i32
    %c0_i32_0 = arith.constant 0 : i32
    return %c0_i32 : i32
  }
  func.func @transform_3(%arg0: i32) -> (i32, i32) {
    %c0_i32 = arith.constant 0 : i32
    %c0_i32_0 = arith.constant 0 : i32
    %c0_i32_1 = arith.constant 0 : i32
    return %c0_i32, %c0_i32_0 : i32, i32
  }
  func.func @transform_4(%arg0: i32) -> (i32, i32) {
    %c0_i32 = arith.constant 0 : i32
    %c0_i32_0 = arith.constant 0 : i32
    %c0_i32_1 = arith.constant 0 : i32
    return %c0_i32, %c0_i32_0 : i32, i32
  }
  func.func @transform_5(%arg0: i32) -> (i32, i32) {
    %c0_i32 = arith.constant 0 : i32
    %c0_i32_0 = arith.constant 0 : i32
    %c0_i32_1 = arith.constant 0 : i32
    return %c0_i32, %c0_i32_0 : i32, i32
  }
  func.func @transform_6(%arg0: i32) -> (i32, i32) {
    %c0_i32 = arith.constant 0 : i32
    %c0_i32_0 = arith.constant 0 : i32
    %c0_i32_1 = arith.constant 0 : i32
    return %c0_i32, %c0_i32_0 : i32, i32
  }
  func.func @transform_7(%arg0: i32) -> (i32, i32) {
    %c0_i32 = arith.constant 0 : i32
    %c0_i32_0 = arith.constant 0 : i32
    %c0_i32_1 = arith.constant 0 : i32
    return %c0_i32, %c0_i32_0 : i32, i32
  }
  func.func @transform_8(%arg0: i32) -> (i32, i32, i32) {
    %c0_i32 = arith.constant 0 : i32
    %c0_i32_0 = arith.constant 0 : i32
    %c0_i32_1 = arith.constant 0 : i32
    return %arg0, %c0_i32, %c0_i32_0 : i32, i32, i32
  }
}

</mosaic_0001>

<llo_original>
// kernel: tpu_custom_call.1
$region0: #{tpu_custom_call.1}
  #allocation0 [shape = 'u32[]', space=smem, size = 0x4, offset = 0x4, fixed_abs, tag = 'smem constant byte address 0x4 - core index']
  #allocation1 [shape = 'u32[72,128]{1,0:T(1,128)}', space=vmem, size = 0x9000, scoped, tag = 'internal scratch']
  #allocation2 [shape = 'f32[8,768]{1,0:T(8,128)}', space=vmem, size = 0x6000, scoped, tag = 'scratch operand']
  #allocation3 [shape = 'f32[8,512]{1,0:T(8,128)}', space=vmem, size = 0x4000, scoped, tag = 'scratch operand']
  #allocation4 [shape = 'f32[1]{0:T(128)S(6)}', space=smem, size = 0x200, scoped, tag = 'scoped memory for tpu_custom_call.1']
  %s0 = inlined_call_operand.hbm [shape: f32[2,4,128], index: 0, kind: input, shape index: {}]
  %s1 = inlined_call_operand.vmem [shape: f32[4,1], index: 1, kind: input, shape index: {}]
  %s2 = inlined_call_operand.<no memory space> [shape: f32[1], index: 2, kind: input, shape index: {}]
  %s3 = inlined_call_operand.hbm [shape: f32[256,128], index: 3, kind: input, shape index: {}]
  %s4 = inlined_call_operand.hbm [shape: f32[384,128], index: 4, kind: input, shape index: {}]
  %s5 = inlined_call_operand.hbm [shape: f32[640,128], index: 5, kind: input, shape index: {}]
  %s6 = inlined_call_operand.hbm [shape: f32[768,128], index: 6, kind: input, shape index: {}]
  %s7 = inlined_call_operand.hbm [shape: f32[512,128], index: 7, kind: input, shape index: {}]
  %s8 = inlined_call_operand.vmem [shape: f32[2,12,128], index: 8, kind: output, shape index: {}]
  %s9 = sld [smem:[#allocation0]]
  $region89: #{tpu_custom_call.1} parent=0
    _
  %s11 = ssub.s32 1, %s9
  %s12 = scalar_select 0, %s11, %s9
  %13 = sst [smem:[#allocation4]] %s2
  $region1: #{tpu_custom_call.1} parent=0
    #allocation5 [shape = 'u8[4096]{0}', space=vmem, size = 0x1000, scoped, tag = 'input window, operand 0']
    #allocation6 [shape = 's32[2]{0}', space=sflag, size = 0x8, scoped, tag = 'scoped memory for tpu_custom_call.1']
    #allocation7 [shape = 'u8[131072]{0}', space=vmem, size = 0x20000, scoped, tag = 'input window, operand 3, single buffered']
    #allocation8 [shape = 's32[1]{0}', space=sflag, size = 0x4, scoped, tag = 'scoped memory for tpu_custom_call.1']
    #allocation9 [shape = 'u8[196608]{0}', space=vmem, size = 0x30000, scoped, tag = 'input window, operand 4, single buffered']
    #allocation10 [shape = 'u8[327680]{0}', space=vmem, size = 0x50000, scoped, tag = 'input window, operand 5, single buffered']
    #allocation11 [shape = 's32[1]{0}', space=sflag, size = 0x4, scoped, tag = 'scoped memory for tpu_custom_call.1']
    #allocation12 [shape = 'u8[393216]{0}', space=vmem, size = 0x60000, scoped, tag = 'input window, operand 6, single buffered']
    #allocation13 [shape = 'u8[262144]{0}', space=vmem, size = 0x40000, scoped, tag = 'input window, operand 7, single buffered']
    #allocation14 [shape = 's32[1]{0}', space=sflag, size = 0x4, scoped, tag = 'scoped memory for tpu_custom_call.1']
    %14 = vsyncpa [#allocation6], 0
    %s15 = scalar_lea.sflag [#allocation6], 1
    %16 = vsyncpa %s15, 0
    %17 = vsyncpa [#allocation8], 0
    %18 = vsyncpa [#allocation11], 0
    %19 = vsyncpa [#allocation14], 0
    loop: start=0, step=1, limit=4
    $region2: #{tpu_custom_call.1} parent=1 // loop_pre_header
      _
    $region3: #{tpu_custom_call.1} parent=1 // loop_header
      %s21 = sphi 0, %s25
      %p22 = scmp.ge.s32.totalorder %s21, 4
      %s31 = sphi 0, %s33
      %s34 = sphi 0, %s31
      %s35 = sphi 0, %s34
      %s51 = sphi 0, %s35
      %s55 = sphi 0, %s55
      %s57 = sphi 0, %s55
      %s58 = sphi 0, %s57
      %s72 = sphi 0, %s58
      %s76 = sphi 0, %s76
      %s78 = sphi 0, %s76
      %s79 = sphi 0, %s78
      %s93 = sphi 0, %s79
      %s97 = sphi 0, %s97
      %s99 = sphi 0, %s97
      %s100 = sphi 0, %s99
      %s114 = sphi 0, %s100
      %s118 = sphi 0, %s118
      %s120 = sphi 0, %s118
      %s121 = sphi 0, %s120
      %s135 = sphi 0, %s121
      %s139 = sphi 0, %s139
      %s141 = sphi 0, %s139
      %s142 = sphi 0, %s141
      %s156 = sphi 0, %s142
      %s160 = sphi 0, %s160
      %s162 = sphi 0, %s160
      %s163 = sphi 0, %s162
      %s177 = sphi 0, %s163
      %s181 = sphi 0, %s181
      %s183 = sphi 0, %s181
      %s184 = sphi 0, %s183
      %s198 = sphi 0, %s184
      %s204 = sphi 0, %s206
      %s207 = sphi 0, %s204
      %s208 = sphi 0, %s207
      %s224 = sphi 0, %s208
    $region4: #{tpu_custom_call.1} parent=1 // loop_header_branch
      %24 = sbr.rel (%p22) target = $region8
    $region5: #{tpu_custom_call.1} parent=1 // loop_body
      %s26 = ssub.s32 %s21, 1
      %s27 = ssub.s32 %s21, 2
      %s28 = sadd.s32 %s21, 1
      %s29 = ssub.s32 %s21, %s28
      %p30 = scmp.eq.s32.totalorder %s29, 0
      %s32 = sadd.s32 %s31, 1
      %s33 = scalar_select %p30, %s31, %s32
      %p36 = pneg %p30
      %p37 = scmp.eq.s32.totalorder %s21, 1
      %p38 = por %p36, %p37
      %p39 = scmp.ne.s32.totalorder %s31, %s34
      %p40 = scmp.eq.s32.totalorder %s21, 0
      %p41 = por %p39, %p40
      %p42 = scmp.ne.s32.totalorder %s31, %s34
      %p43 = scmp.eq.s32.totalorder %s26, 1
      %p44 = por %p42, %p43
      %p45 = scmp.ne.s32.totalorder %s34, %s35
      %p46 = scmp.eq.s32.totalorder %s26, 0
      %p47 = por %p45, %p46
      %p48 = scmp.ne.s32.totalorder %s34, %s35
      %p49 = scmp.eq.s32.totalorder %s27, 1
      %p50 = por %p48, %p49
      %p52 = scmp.ne.s32.totalorder %s35, %s51
      %p53 = scmp.eq.s32.totalorder %s27, 0
      %p54 = por %p52, %p53
      %s56 = sadd.s32 %s55, 1
      %p59 = scmp.eq.s32.totalorder %s21, 1
      %p60 = scmp.ne.s32.totalorder %s55, %s57
      %p61 = scmp.eq.s32.totalorder %s21, 0
      %p62 = por %p60, %p61
      %p63 = scmp.ne.s32.totalorder %s55, %s57
      %p64 = scmp.eq.s32.totalorder %s26, 1
      %p65 = por %p63, %p64
      %p66 = scmp.ne.s32.totalorder %s57, %s58
      %p67 = scmp.eq.s32.totalorder %s26, 0
      %p68 = por %p66, %p67
      %p69 = scmp.ne.s32.totalorder %s57, %s58
      %p70 = scmp.eq.s32.totalorder %s27, 1
      %p71 = por %p69, %p70
      %p73 = scmp.ne.s32.totalorder %s58, %s72
      %p74 = scmp.eq.s32.totalorder %s27, 0
      %p75 = por %p73, %p74
      %s77 = sadd.s32 %s76, 1
      %p80 = scmp.eq.s32.totalorder %s21, 1
      %p81 = scmp.ne.s32.totalorder %s76, %s78
      %p82 = scmp.eq.s32.totalorder %s21, 0
      %p83 = por %p81, %p82
      %p84 = scmp.ne.s32.totalorder %s76, %s78
      %p85 = scmp.eq.s32.totalorder %s26, 1
      %p86 = por %p84, %p85
      %p87 = scmp.ne.s32.totalorder %s78, %s79
      %p88 = scmp.eq.s32.totalorder %s26, 0
      %p89 = por %p87, %p88
      %p90 = scmp.ne.s32.totalorder %s78, %s79
      %p91 = scmp.eq.s32.totalorder %s27, 1
      %p92 = por %p90, %p91
      %p94 = scmp.ne.s32.totalorder %s79, %s93
      %p95 = scmp.eq.s32.totalorder %s27, 0
      %p96 = por %p94, %p95
      %s98 = sadd.s32 %s97, 1
      %p101 = scmp.eq.s32.totalorder %s21, 1
      %p102 = scmp.ne.s32.totalorder %s97, %s99
      %p103 = scmp.eq.s32.totalorder %s21, 0
      %p104 = por %p102, %p103
      %p105 = scmp.ne.s32.totalorder %s97, %s99
      %p106 = scmp.eq.s32.totalorder %s26, 1
      %p107 = por %p105, %p106
      %p108 = scmp.ne.s32.totalorder %s99, %s100
      %p109 = scmp.eq.s32.totalorder %s26, 0
      %p110 = por %p108, %p109
      %p111 = scmp.ne.s32.totalorder %s99, %s100
      %p112 = scmp.eq.s32.totalorder %s27, 1
      %p113 = por %p111, %p112
      %p115 = scmp.ne.s32.totalorder %s100, %s114
      %p116 = scmp.eq.s32.totalorder %s27, 0
      %p117 = por %p115, %p116
      %s119 = sadd.s32 %s118, 1
      %p122 = scmp.eq.s32.totalorder %s21, 1
      %p123 = scmp.ne.s32.totalorder %s118, %s120
      %p124 = scmp.eq.s32.totalorder %s21, 0
      %p125 = por %p123, %p124
      %p126 = scmp.ne.s32.totalorder %s118, %s120
      %p127 = scmp.eq.s32.totalorder %s26, 1
      %p128 = por %p126, %p127
      %p129 = scmp.ne.s32.totalorder %s120, %s121
      %p130 = scmp.eq.s32.totalorder %s26, 0
      %p131 = por %p129, %p130
      %p132 = scmp.ne.s32.totalorder %s120, %s121
      %p133 = scmp.eq.s32.totalorder %s27, 1
      %p134 = por %p132, %p133
      %p136 = scmp.ne.s32.totalorder %s121, %s135
      %p137 = scmp.eq.s32.totalorder %s27, 0
      %p138 = por %p136, %p137
      %s140 = sadd.s32 %s139, 1
      %p143 = scmp.eq.s32.totalorder %s21, 1
      %p144 = scmp.ne.s32.totalorder %s139, %s141
      %p145 = scmp.eq.s32.totalorder %s21, 0
      %p146 = por %p144, %p145
      %p147 = scmp.ne.s32.totalorder %s139, %s141
      %p148 = scmp.eq.s32.totalorder %s26, 1
      %p149 = por %p147, %p148
      %p150 = scmp.ne.s32.totalorder %s141, %s142
      %p151 = scmp.eq.s32.totalorder %s26, 0
      %p152 = por %p150, %p151
      %p153 = scmp.ne.s32.totalorder %s141, %s142
      %p154 = scmp.eq.s32.totalorder %s27, 1
      %p155 = por %p153, %p154
      %p157 = scmp.ne.s32.totalorder %s142, %s156
      %p158 = scmp.eq.s32.totalorder %s27, 0
      %p159 = por %p157, %p158
      %s161 = sadd.s32 %s160, 1
      %p164 = scmp.eq.s32.totalorder %s21, 1
      %p165 = scmp.ne.s32.totalorder %s160, %s162
      %p166 = scmp.eq.s32.totalorder %s21, 0
      %p167 = por %p165, %p166
      %p168 = scmp.ne.s32.totalorder %s160, %s162
      %p169 = scmp.eq.s32.totalorder %s26, 1
      %p170 = por %p168, %p169
      %p171 = scmp.ne.s32.totalorder %s162, %s163
      %p172 = scmp.eq.s32.totalorder %s26, 0
      %p173 = por %p171, %p172
      %p174 = scmp.ne.s32.totalorder %s162, %s163
      %p175 = scmp.eq.s32.totalorder %s27, 1
      %p176 = por %p174, %p175
      %p178 = scmp.ne.s32.totalorder %s163, %s177
      %p179 = scmp.eq.s32.totalorder %s27, 0
      %p180 = por %p178, %p179
      %s182 = sadd.s32 %s181, 1
      %p185 = scmp.eq.s32.totalorder %s21, 1
      %p186 = scmp.ne.s32.totalorder %s181, %s183
      %p187 = scmp.eq.s32.totalorder %s21, 0
      %p188 = por %p186, %p187
      %p189 = scmp.ne.s32.totalorder %s181, %s183
      %p190 = scmp.eq.s32.totalorder %s26, 1
      %p191 = por %p189, %p190
      %p192 = scmp.ne.s32.totalorder %s183, %s184
      %p193 = scmp.eq.s32.totalorder %s26, 0
      %p194 = por %p192, %p193
      %p195 = scmp.ne.s32.totalorder %s183, %s184
      %p196 = scmp.eq.s32.totalorder %s27, 1
      %p197 = por %p195, %p196
      %p199 = scmp.ne.s32.totalorder %s184, %s198
      %p200 = scmp.eq.s32.totalorder %s27, 0
      %p201 = por %p199, %p200
      %s202 = ssub.s32 %s21, %s28
      %p203 = scmp.eq.s32.totalorder %s202, 0
      %s205 = sadd.s32 %s204, 1
      %s206 = scalar_select %p203, %s204, %s205
      %p209 = pneg %p203
      %p210 = scmp.eq.s32.totalorder %s21, 1
      %p211 = por %p209, %p210
      %p212 = scmp.ne.s32.totalorder %s204, %s207
      %p213 = scmp.eq.s32.totalorder %s21, 0
      %p214 = por %p212, %p213
      %p215 = scmp.ne.s32.totalorder %s204, %s207
      %p216 = scmp.eq.s32.totalorder %s26, 1
      %p217 = por %p215, %p216
      %p218 = scmp.ne.s32.totalorder %s207, %s208
      %p219 = scmp.eq.s32.totalorder %s26, 0
      %p220 = por %p218, %p219
      %p221 = scmp.ne.s32.totalorder %s207, %s208
      %p222 = scmp.eq.s32.totalorder %s27, 1
      %p223 = por %p221, %p222
      %p225 = scmp.ne.s32.totalorder %s208, %s224
      %p226 = scmp.eq.s32.totalorder %s27, 0
      %p227 = por %p225, %p226
      %p228 = scmp.le.s32.totalorder 1, %s21
      %p229 = scmp.lt.s32.totalorder %s21, 3
      %p230 = pnand %p228, %p229
      %p231 = pneg %p230
      // Predicated region
      $region9: #{tpu_custom_call.1} parent=5 // pred_check
        _
      $region10: #{tpu_custom_call.1} parent=5 // pred_check_branch
        %233 = sbr.rel (%p230) target = $region12
      $region11: #{tpu_custom_call.1} parent=5 // pred_region
        %s234 = ssub.s32 %s21, 1
        // Predicated region
        $region13: #{tpu_custom_call.1} parent=11 // pred_check
          %p235 = pneg %p68
        $region14: #{tpu_custom_call.1} parent=11 // pred_check_branch
          %237 = sbr.rel (%p235) target = $region16
        $region15: #{tpu_custom_call.1} parent=11 // pred_region
          _
        $region16: #{tpu_custom_call.1} parent=11 // pred_fallthru
          _
        // Predicated region
        $region17: #{tpu_custom_call.1} parent=11 // pred_check
          %p238 = pneg %p89
        $region18: #{tpu_custom_call.1} parent=11 // pred_check_branch
          %240 = sbr.rel (%p238) target = $region20
        $region19: #{tpu_custom_call.1} parent=11 // pred_region
          _
        $region20: #{tpu_custom_call.1} parent=11 // pred_fallthru
          _
        // Predicated region
        $region21: #{tpu_custom_call.1} parent=11 // pred_check
          %p241 = pneg %p110
        $region22: #{tpu_custom_call.1} parent=11 // pred_check_branch
          %243 = sbr.rel (%p241) target = $region24
        $region23: #{tpu_custom_call.1} parent=11 // pred_region
          %245 = vsyncadd [#allocation8], 0
          %s246 = sshll.u32 %s3, 4
          %s247 = int_to_ptr.hbm [resolvable:$true] %s246
          %s248 = sshll.u32 [#allocation7], 4
          %s249 = int_to_ptr.vmem [resolvable:$true] %s248
          %254 = dma.hbm_to_vmem [thread:$0]  %s247, 4096, %s249, [#allocation8], 128, 128, 8
        $region24: #{tpu_custom_call.1} parent=11 // pred_fallthru
          _
        // Predicated region
        $region25: #{tpu_custom_call.1} parent=11 // pred_check
          %p255 = pneg %p131
        $region26: #{tpu_custom_call.1} parent=11 // pred_check_branch
          %257 = sbr.rel (%p255) target = $region28
        $region27: #{tpu_custom_call.1} parent=11 // pred_region
          %259 = vsyncadd [#allocation8], 0
          %s260 = sshll.u32 %s4, 4
          %s261 = int_to_ptr.hbm [resolvable:$true] %s260
          %s262 = sshll.u32 [#allocation9], 4
          %s263 = int_to_ptr.vmem [resolvable:$true] %s262
          %268 = dma.hbm_to_vmem [thread:$0]  %s261, 6144, %s263, [#allocation8], 128, 128, 8
        $region28: #{tpu_custom_call.1} parent=11 // pred_fallthru
          _
        // Predicated region
        $region29: #{tpu_custom_call.1} parent=11 // pred_check
          %p269 = pneg %p152
        $region30: #{tpu_custom_call.1} parent=11 // pred_check_branch
          %271 = sbr.rel (%p269) target = $region32
        $region31: #{tpu_custom_call.1} parent=11 // pred_region
          %273 = vsyncadd [#allocation11], 0
          %s274 = sshll.u32 %s5, 4
          %s275 = int_to_ptr.hbm [resolvable:$true] %s274
          %s276 = sshll.u32 [#allocation10], 4
          %s277 = int_to_ptr.vmem [resolvable:$true] %s276
          %282 = dma.hbm_to_vmem [thread:$0]  %s275, 10240, %s277, [#allocation11], 128, 128, 8
        $region32: #{tpu_custom_call.1} parent=11 // pred_fallthru
          _
        // Predicated region
        $region33: #{tpu_custom_call.1} parent=11 // pred_check
          %p283 = pneg %p173
        $region34: #{tpu_custom_call.1} parent=11 // pred_check_branch
          %285 = sbr.rel (%p283) target = $region36
        $region35: #{tpu_custom_call.1} parent=11 // pred_region
          %287 = vsyncadd [#allocation11], 0
          %s288 = sshll.u32 %s6, 4
          %s289 = int_to_ptr.hbm [resolvable:$true] %s288
          %s290 = sshll.u32 [#allocation12], 4
          %s291 = int_to_ptr.vmem [resolvable:$true] %s290
          %296 = dma.hbm_to_vmem [thread:$0]  %s289, 12288, %s291, [#allocation11], 128, 128, 8
        $region36: #{tpu_custom_call.1} parent=11 // pred_fallthru
          _
        // Predicated region
        $region37: #{tpu_custom_call.1} parent=11 // pred_check
          %p297 = pneg %p194
        $region38: #{tpu_custom_call.1} parent=11 // pred_check_branch
          %299 = sbr.rel (%p297) target = $region40
        $region39: #{tpu_custom_call.1} parent=11 // pred_region
          %301 = vsyncadd [#allocation14], 0
          %s302 = sshll.u32 %s7, 4
          %s303 = int_to_ptr.hbm [resolvable:$true] %s302
          %s304 = sshll.u32 [#allocation13], 4
          %s305 = int_to_ptr.vmem [resolvable:$true] %s304
          %310 = dma.hbm_to_vmem [thread:$0]  %s303, 8192, %s305, [#allocation14], 128, 128, 8
        $region40: #{tpu_custom_call.1} parent=11 // pred_fallthru
          _
      $region12: #{tpu_custom_call.1} parent=5 // pred_fallthru
        _
      %p311 = scmp.lt.s32.totalorder %s21, 2
      // Predicated region
      $region41: #{tpu_custom_call.1} parent=5 // pred_check
        %p312 = pneg %p311
      $region42: #{tpu_custom_call.1} parent=5 // pred_check_branch
        %314 = sbr.rel (%p312) target = $region44
      $region43: #{tpu_custom_call.1} parent=5 // pred_region
        // Predicated region
        $region45: #{tpu_custom_call.1} parent=43 // pred_check
          %p315 = pneg %p41
        $region46: #{tpu_custom_call.1} parent=43 // pred_check_branch
          %317 = sbr.rel (%p315) target = $region48
        $region47: #{tpu_custom_call.1} parent=43 // pred_region
          %s318 = sand.u32 %s31, 1
          %s319 = scalar_lea.sflag [#allocation6], %s318
          %s320 = sand.u32 %s31, 1
          %s321 = smul.addr %s320, 4
          %s322 = scalar_lea.vmem [#allocation5], %s321
          %324 = vsyncadd %s319, 0
          %s325 = smul.addr %s21, 4
          %s326 = scalar_lea.hbm %s0, %s325
          %s328 = sshll.u32 %s326, 4
          %s329 = int_to_ptr.hbm [resolvable:$true] %s328
          %s330 = sshll.u32 %s322, 4
          %s331 = int_to_ptr.vmem [resolvable:$true] %s330
          %333 = dma.hbm_to_vmem [thread:$0]  %s329, 64, %s331, %s319
        $region48: #{tpu_custom_call.1} parent=43 // pred_fallthru
          _
      $region44: #{tpu_custom_call.1} parent=5 // pred_fallthru
        _
      %p334 = scmp.le.s32.totalorder 1, %s21
      %p335 = scmp.lt.s32.totalorder %s21, 3
      %p336 = pnand %p334, %p335
      %p337 = pneg %p336
      // Predicated region
      $region49: #{tpu_custom_call.1} parent=5 // pred_check
        _
      $region50: #{tpu_custom_call.1} parent=5 // pred_check_branch
        %339 = sbr.rel (%p336) target = $region52
      $region51: #{tpu_custom_call.1} parent=5 // pred_region
        %s340 = ssub.s32 %s21, 1
        %s341 = sand.u32 %s34, 1
        %s342 = scalar_lea.sflag [#allocation6], %s341
        %s343 = sand.u32 %s34, 1
        %s344 = smul.addr %s343, 4
        %s345 = scalar_lea.vmem [#allocation5], %s344
        // Predicated region
        $region53: #{tpu_custom_call.1} parent=51 // pred_check
          %p346 = pneg %p47
        $region54: #{tpu_custom_call.1} parent=51 // pred_check_branch
          %348 = sbr.rel (%p346) target = $region56
        $region55: #{tpu_custom_call.1} parent=51 // pred_region
          %350 = dma.done %s342, 64
        $region56: #{tpu_custom_call.1} parent=51 // pred_fallthru
          _
        // Predicated region
        $region57: #{tpu_custom_call.1} parent=51 // pred_check
          %p351 = pneg %p110
        $region58: #{tpu_custom_call.1} parent=51 // pred_check_branch
          %353 = sbr.rel (%p351) target = $region60
        $region59: #{tpu_custom_call.1} parent=51 // pred_region
          %355 = dma.done [#allocation8], 4096
        $region60: #{tpu_custom_call.1} parent=51 // pred_fallthru
          _
        // Predicated region
        $region61: #{tpu_custom_call.1} parent=51 // pred_check
          %p356 = pneg %p131
        $region62: #{tpu_custom_call.1} parent=51 // pred_check_branch
          %358 = sbr.rel (%p356) target = $region64
        $region63: #{tpu_custom_call.1} parent=51 // pred_region
          %360 = dma.done [#allocation8], 6144
        $region64: #{tpu_custom_call.1} parent=51 // pred_fallthru
          _
        // Predicated region
        $region65: #{tpu_custom_call.1} parent=51 // pred_check
          %p361 = pneg %p152
        $region66: #{tpu_custom_call.1} parent=51 // pred_check_branch
          %363 = sbr.rel (%p361) target = $region68
        $region67: #{tpu_custom_call.1} parent=51 // pred_region
          %365 = dma.done [#allocation11], 10240
        $region68: #{tpu_custom_call.1} parent=51 // pred_fallthru
          _
        // Predicated region
        $region69: #{tpu_custom_call.1} parent=51 // pred_check
          %p366 = pneg %p173
        $region70: #{tpu_custom_call.1} parent=51 // pred_check_branch
          %368 = sbr.rel (%p366) target = $region72
        $region71: #{tpu_custom_call.1} parent=51 // pred_region
          %370 = dma.done [#allocation11], 12288
        $region72: #{tpu_custom_call.1} parent=51 // pred_fallthru
          _
        // Predicated region
        $region73: #{tpu_custom_call.1} parent=51 // pred_check
          %p371 = pneg %p194
        $region74: #{tpu_custom_call.1} parent=51 // pred_check_branch
          %373 = sbr.rel (%p371) target = $region76
        $region75: #{tpu_custom_call.1} parent=51 // pred_region
          %375 = dma.done [#allocation14], 8192
        $region76: #{tpu_custom_call.1} parent=51 // pred_fallthru
          _
        %s376 = sand.u32 %s34, 1
        %s377 = scalar_lea.sflag [#allocation6], %s376
        %s378 = sand.u32 %s34, 1
        %s379 = smul.addr %s378, 4
        %s380 = scalar_lea.vmem [#allocation5], %s379
        %p381 = pneg %p47
        %p382 = pneg %p44
        %p383 = pneg %p68
        %p384 = pneg %p65
        %p385 = pneg %p89
        %p386 = pneg %p86
        %p387 = pneg %p110
        %p388 = pneg %p107
        %p389 = pneg %p131
        %p390 = pneg %p128
        %p391 = pneg %p152
        %p392 = pneg %p149
        %p393 = pneg %p173
        %p394 = pneg %p170
        %p395 = pneg %p194
        %p396 = pneg %p191
        %p397 = pneg %p220
        %p398 = pneg %p217
        %p399 = scmp.lt.s32.totalorder %s26, 1
        %s400 = scalar_select %p399, %s26, 1
        %s401 = smul.addr %s400, 2
        %s402 = smul.addr %s401, 8
        %s403 = scalar_lea.vmem %s8, %s402
        %p404 = scmp.lt.s32.totalorder %s26, 1
        %s405 = scalar_select %p404, %s26, 1
        %s406 = smul.addr %s405, 2
        %s407 = smul.addr %s406, 8
        %s408 = scalar_lea.vmem %s8, %s407
        %v409 = vld [vmem:[%s1] sm:$0xf]
        %s410 = sld [smem:[#allocation4]]
        %v411 = vlaneseq
        %v412 = vshrl.u32 %v411, 7
        %413 = vst [vmem:[#allocation2] sm:$0xff] 0.0
        %414 = vst [vmem:[#allocation2 + $0x8] sm:$0xff] 0.0
        %415 = vst [vmem:[#allocation2 + $0x10] sm:$0xff] 0.0
        %416 = vst [vmem:[#allocation2 + $0x18] sm:$0xff] 0.0
        %417 = vst [vmem:[#allocation2 + $0x20] sm:$0xff] 0.0
        %418 = vst [vmem:[#allocation2 + $0x28] sm:$0xff] 0.0
        %v419 = vld [vmem:[%s345] sm:$0xf]
        %420 = vrot.lane.b32.xlu0 %v419, 127
        %v421 = vpop.permute.xlu0 %420
        %v422 = vmax.f32 %v419, %v421
        %424 = vset.pattern.permute.xlu0 0
        %425 = vperm.xlu0 %424, %v409
        %v426 = vpop.permute.xlu0 %425
        %v428 = vmul.f32 %v422, %v426
        %vm429 = vcmask 1043456
        %v430 = vsel %vm429, %v428, 0.0
        %v431 = vrot.slane %v430, 4
        %v432 = vadd.f32 %v430, %v431
        %v433 = vrot.slane %v432, 2
        %v434 = vadd.f32 %v432, %v433
        %v435 = vrot.slane %v434, 1
        %v436 = vadd.f32 %v434, %v435
        %v437 = vstv %s410
        %v438 = vadd.f32 %v436, %v437
        %439 = vst [vmem:[#allocation2] sm:$0x1] %v438
        %v440 = vld [vmem:[#allocation7] sm:$0xff]
        %v441 = vld [vmem:[#allocation7 + $0x8] sm:$0xff]
        %v442 = vld [vmem:[#allocation7 + $0x10] sm:$0xff]
        %v443 = vld [vmem:[#allocation7 + $0x18] sm:$0xff]
        %v444 = vld [vmem:[#allocation7 + $0x20] sm:$0xff]
        %v445 = vld [vmem:[#allocation7 + $0x28] sm:$0xff]
        %v446 = vld [vmem:[#allocation7 + $0x30] sm:$0xff]
        %v447 = vld [vmem:[#allocation7 + $0x38] sm:$0xff]
        %v448 = vld [vmem:[#allocation7 + $0x40] sm:$0xff]
        %v449 = vld [vmem:[#allocation7 + $0x48] sm:$0xff]
        %v450 = vld [vmem:[#allocation7 + $0x50] sm:$0xff]
        %v451 = vld [vmem:[#allocation7 + $0x58] sm:$0xff]
        %v452 = vld [vmem:[#allocation7 + $0x60] sm:$0xff]
        %v453 = vld [vmem:[#allocation7 + $0x68] sm:$0xff]
        %v454 = vld [vmem:[#allocation7 + $0x70] sm:$0xff]
        %v455 = vld [vmem:[#allocation7 + $0x78] sm:$0xff]
        %v456 = vld [vmem:[#allocation7 + $0x80] sm:$0xff]
        %v457 = vld [vmem:[#allocation7 + $0x88] sm:$0xff]
        %v458 = vld [vmem:[#allocation7 + $0x90] sm:$0xff]
        %v459 = vld [vmem:[#allocation7 + $0x98] sm:$0xff]
        %v460 = vld [vmem:[#allocation7 + $0xa0] sm:$0xff]
        %v461 = vld [vmem:[#allocation7 + $0xa8] sm:$0xff]
        %v462 = vld [vmem:[#allocation7 + $0xb0] sm:$0xff]
        %v463 = vld [vmem:[#allocation7 + $0xb8] sm:$0xff]
        %v464 = vld [vmem:[#allocation7 + $0xc0] sm:$0xff]
        %v465 = vld [vmem:[#allocation7 + $0xc8] sm:$0xff]
        %v466 = vld [vmem:[#allocation7 + $0xd0] sm:$0xff]
        %v467 = vld [vmem:[#allocation7 + $0xd8] sm:$0xff]
        %v468 = vld [vmem:[#allocation7 + $0xe0] sm:$0xff]
        %v469 = vld [vmem:[#allocation7 + $0xe8] sm:$0xff]
        %v470 = vld [vmem:[#allocation7 + $0xf0] sm:$0xff]
        %v471 = vld [vmem:[#allocation7 + $0xf8] sm:$0xff]
        %vm472 = vcmp.eq.s32.totalorder %v412, 0
        %v473 = vld [vmem:[#allocation2] sm:$0xff]
        %v474 = vld [vmem:[#allocation2 + $0x8] sm:$0xff]
        %v475 = vsel %vm472, 1, 0
        %vm476 = vcmp.eq.s32.totalorder %v475, 1
        %v477 = vsel %vm476, %v473, 0.0
        %v478 = vsel %vm476, %v474, 0.0
        %479 = vmatpush.msra.mxu0 %v455
        %480 = vmatpush.msra.mxu0 %v454
        %481 = vmatpush.msra.mxu0 %v453
        %482 = vmatpush.msra.mxu0 %v452
        %483 = vmatpush.msra.mxu0 %v451
        %484 = vmatpush.msra.mxu0 %v450
        %485 = vmatpush.msra.mxu0 %v449
        %486 = vmatpush.msra.mxu0 %v448
        %487 = vmatpush.msra.mxu0 %v447
        %488 = vmatpush.msra.mxu0 %v446
        %489 = vmatpush.msra.mxu0 %v445
        %490 = vmatpush.msra.mxu0 %v444
        %491 = vmatpush.msra.mxu0 %v443
        %492 = vmatpush.msra.mxu0 %v442
        %493 = vmatpush.msra.mxu0 %v441
        %494 = vmatpush.msra.mxu0 %v440
        %495 = vmatmul.f32.gmra.mxu0 %v477
        %v496 = vpop.f32.mrf.mxu0
        %v497 = vadd.f32 0.0, %v496
        %498 = vdwg.mxu0
        %499 = vmatpush.msra.mxu0 %v471
        %500 = vmatpush.msra.mxu0 %v470
        %501 = vmatpush.msra.mxu0 %v469
        %502 = vmatpush.msra.mxu0 %v468
        %503 = vmatpush.msra.mxu0 %v467
        %504 = vmatpush.msra.mxu0 %v466
        %505 = vmatpush.msra.mxu0 %v465
        %506 = vmatpush.msra.mxu0 %v464
        %507 = vmatpush.msra.mxu0 %v463
        %508 = vmatpush.msra.mxu0 %v462
        %509 = vmatpush.msra.mxu0 %v461
        %510 = vmatpush.msra.mxu0 %v460
        %511 = vmatpush.msra.mxu0 %v459
        %512 = vmatpush.msra.mxu0 %v458
        %513 = vmatpush.msra.mxu0 %v457
        %514 = vmatpush.msra.mxu0 %v456
        %515 = vmatmul.f32.gmra.mxu0 %v478
        %v516 = vpop.f32.mrf.mxu0
        %v517 = vadd.f32 %v497, %v516
        %518 = vdwg.mxu0
        %519 = vst [vmem:[#allocation3] sm:$0xff] %v517
        %520 = vrot.lane.b32.xlu0 %v419, 126
        %v521 = vpop.permute.xlu0 %520
        %v522 = vmax.f32 %v422, %v521
        %v523 = vmul.f32 %v522, %v426
        %v524 = vsel %vm429, %v523, 0.0
        %v525 = vrot.slane %v524, 4
        %v526 = vadd.f32 %v524, %v525
        %v527 = vrot.slane %v526, 2
        %v528 = vadd.f32 %v526, %v527
        %v529 = vrot.slane %v528, 1
        %v530 = vadd.f32 %v528, %v529
        %v531 = vadd.f32 %v530, %v437
        %532 = vst [vmem:[#allocation2 + $0x1] sm:$0x1] %v531
        %v533 = vld [vmem:[#allocation9] sm:$0xff]
        %v534 = vld [vmem:[#allocation9 + $0x8] sm:$0xff]
        %v535 = vld [vmem:[#allocation9 + $0x10] sm:$0xff]
        %v536 = vld [vmem:[#allocation9 + $0x18] sm:$0xff]
        %v537 = vld [vmem:[#allocation9 + $0x20] sm:$0xff]
        %v538 = vld [vmem:[#allocation9 + $0x28] sm:$0xff]
        %v539 = vld [vmem:[#allocation9 + $0x30] sm:$0xff]
        %v540 = vld [vmem:[#allocation9 + $0x38] sm:$0xff]
        %v541 = vld [vmem:[#allocation9 + $0x40] sm:$0xff]
        %v542 = vld [vmem:[#allocation9 + $0x48] sm:$0xff]
        %v543 = vld [vmem:[#allocation9 + $0x50] sm:$0xff]
        %v544 = vld [vmem:[#allocation9 + $0x58] sm:$0xff]
        %v545 = vld [vmem:[#allocation9 + $0x60] sm:$0xff]
        %v546 = vld [vmem:[#allocation9 + $0x68] sm:$0xff]
        %v547 = vld [vmem:[#allocation9 + $0x70] sm:$0xff]
        %v548 = vld [vmem:[#allocation9 + $0x78] sm:$0xff]
        %v549 = vld [vmem:[#allocation9 + $0x80] sm:$0xff]
        %v550 = vld [vmem:[#allocation9 + $0x88] sm:$0xff]
        %v551 = vld [vmem:[#allocation9 + $0x90] sm:$0xff]
        %v552 = vld [vmem:[#allocation9 + $0x98] sm:$0xff]
        %v553 = vld [vmem:[#allocation9 + $0xa0] sm:$0xff]
        %v554 = vld [vmem:[#allocation9 + $0xa8] sm:$0xff]
        %v555 = vld [vmem:[#allocation9 + $0xb0] sm:$0xff]
        %v556 = vld [vmem:[#allocation9 + $0xb8] sm:$0xff]
        %v557 = vld [vmem:[#allocation9 + $0xc0] sm:$0xff]
        %v558 = vld [vmem:[#allocation9 + $0xc8] sm:$0xff]
        %v559 = vld [vmem:[#allocation9 + $0xd0] sm:$0xff]
        %v560 = vld [vmem:[#allocation9 + $0xd8] sm:$0xff]
        %v561 = vld [vmem:[#allocation9 + $0xe0] sm:$0xff]
        %v562 = vld [vmem:[#allocation9 + $0xe8] sm:$0xff]
        %v563 = vld [vmem:[#allocation9 + $0xf0] sm:$0xff]
        %v564 = vld [vmem:[#allocation9 + $0xf8] sm:$0xff]
        %v565 = vld [vmem:[#allocation9 + $0x100] sm:$0xff]
        %v566 = vld [vmem:[#allocation9 + $0x108] sm:$0xff]
        %v567 = vld [vmem:[#allocation9 + $0x110] sm:$0xff]
        %v568 = vld [vmem:[#allocation9 + $0x118] sm:$0xff]
        %v569 = vld [vmem:[#allocation9 + $0x120] sm:$0xff]
        %v570 = vld [vmem:[#allocation9 + $0x128] sm:$0xff]
        %v571 = vld [vmem:[#allocation9 + $0x130] sm:$0xff]
        %v572 = vld [vmem:[#allocation9 + $0x138] sm:$0xff]
        %v573 = vld [vmem:[#allocation9 + $0x140] sm:$0xff]
        %v574 = vld [vmem:[#allocation9 + $0x148] sm:$0xff]
        %v575 = vld [vmem:[#allocation9 + $0x150] sm:$0xff]
        %v576 = vld [vmem:[#allocation9 + $0x158] sm:$0xff]
        %v577 = vld [vmem:[#allocation9 + $0x160] sm:$0xff]
        %v578 = vld [vmem:[#allocation9 + $0x168] sm:$0xff]
        %v579 = vld [vmem:[#allocation9 + $0x170] sm:$0xff]
        %v580 = vld [vmem:[#allocation9 + $0x178] sm:$0xff]
        %vm581 = vcmp.eq.s32.totalorder %v412, 1
        %v582 = vld [vmem:[#allocation2] sm:$0xff]
        %v583 = vld [vmem:[#allocation2 + $0x8] sm:$0xff]
        %v584 = vld [vmem:[#allocation2 + $0x10] sm:$0xff]
        %v585 = vsel %vm581, 1, 0
        %vm586 = vcmp.eq.s32.totalorder %v585, 1
        %v587 = vsel %vm586, %v582, 0.0
        %v588 = vsel %vm586, %v583, 0.0
        %v589 = vsel %vm586, %v584, 0.0
        %590 = vmatpush.msra.mxu0 %v548
        %591 = vmatpush.msra.mxu0 %v547
        %592 = vmatpush.msra.mxu0 %v546
        %593 = vmatpush.msra.mxu0 %v545
        %594 = vmatpush.msra.mxu0 %v544
        %595 = vmatpush.msra.mxu0 %v543
        %596 = vmatpush.msra.mxu0 %v542
        %597 = vmatpush.msra.mxu0 %v541
        %598 = vmatpush.msra.mxu0 %v540
        %599 = vmatpush.msra.mxu0 %v539
        %600 = vmatpush.msra.mxu0 %v538
        %601 = vmatpush.msra.mxu0 %v537
        %602 = vmatpush.msra.mxu0 %v536
        %603 = vmatpush.msra.mxu0 %v535
        %604 = vmatpush.msra.mxu0 %v534
        %605 = vmatpush.msra.mxu0 %v533
        %606 = vmatmul.f32.gmra.mxu0 %v587
        %v607 = vpop.f32.mrf.mxu0
        %v608 = vadd.f32 0.0, %v607
        %609 = vdwg.mxu0
        %610 = vmatpush.msra.mxu0 %v564
        %611 = vmatpush.msra.mxu0 %v563
        %612 = vmatpush.msra.mxu0 %v562
        %613 = vmatpush.msra.mxu0 %v561
        %614 = vmatpush.msra.mxu0 %v560
        %615 = vmatpush.msra.mxu0 %v559
        %616 = vmatpush.msra.mxu0 %v558
        %617 = vmatpush.msra.mxu0 %v557
        %618 = vmatpush.msra.mxu0 %v556
        %619 = vmatpush.msra.mxu0 %v555
        %620 = vmatpush.msra.mxu0 %v554
        %621 = vmatpush.msra.mxu0 %v553
        %622 = vmatpush.msra.mxu0 %v552
        %623 = vmatpush.msra.mxu0 %v551
        %624 = vmatpush.msra.mxu0 %v550
        %625 = vmatpush.msra.mxu0 %v549
        %626 = vmatmul.f32.gmra.mxu0 %v588
        %v627 = vpop.f32.mrf.mxu0
        %v628 = vadd.f32 %v608, %v627
        %629 = vdwg.mxu0
        %630 = vmatpush.msra.mxu0 %v580
        %631 = vmatpush.msra.mxu0 %v579
        %632 = vmatpush.msra.mxu0 %v578
        %633 = vmatpush.msra.mxu0 %v577
        %634 = vmatpush.msra.mxu0 %v576
        %635 = vmatpush.msra.mxu0 %v575
        %636 = vmatpush.msra.mxu0 %v574
        %637 = vmatpush.msra.mxu0 %v573
        %638 = vmatpush.msra.mxu0 %v572
        %639 = vmatpush.msra.mxu0 %v571
        %640 = vmatpush.msra.mxu0 %v570
        %641 = vmatpush.msra.mxu0 %v569
        %642 = vmatpush.msra.mxu0 %v568
        %643 = vmatpush.msra.mxu0 %v567
        %644 = vmatpush.msra.mxu0 %v566
        %645 = vmatpush.msra.mxu0 %v565
        %646 = vmatmul.f32.gmra.mxu0 %v589
        %v647 = vpop.f32.mrf.mxu0
        %v648 = vadd.f32 %v628, %v647
        %649 = vdwg.mxu0
        %650 = vst [vmem:[#allocation3 + $0x8] sm:$0xff] %v648
        %651 = vrot.lane.b32.xlu0 %v419, 125
        %v652 = vpop.permute.xlu0 %651
        %v653 = vmax.f32 %v522, %v652
        %654 = vrot.lane.b32.xlu0 %v419, 124
        %v655 = vpop.permute.xlu0 %654
        %v656 = vmax.f32 %v653, %v655
        %v657 = vmul.f32 %v656, %v426
        %v658 = vsel %vm429, %v657, 0.0
        %v659 = vrot.slane %v658, 4
        %v660 = vadd.f32 %v658, %v659
        %v661 = vrot.slane %v660, 2
        %v662 = vadd.f32 %v660, %v661
        %v663 = vrot.slane %v662, 1
        %v664 = vadd.f32 %v662, %v663
        %v665 = vadd.f32 %v664, %v437
        %666 = vst [vmem:[#allocation2 + $0x2] sm:$0x1] %v665
        %v667 = vld [vmem:[#allocation10] sm:$0xff]
        %v668 = vld [vmem:[#allocation10 + $0x8] sm:$0xff]
        %v669 = vld [vmem:[#allocation10 + $0x10] sm:$0xff]
        %v670 = vld [vmem:[#allocation10 + $0x18] sm:$0xff]
        %v671 = vld [vmem:[#allocation10 + $0x20] sm:$0xff]
        %v672 = vld [vmem:[#allocation10 + $0x28] sm:$0xff]
        %v673 = vld [vmem:[#allocation10 + $0x30] sm:$0xff]
        %v674 = vld [vmem:[#allocation10 + $0x38] sm:$0xff]
        %v675 = vld [vmem:[#allocation10 + $0x40] sm:$0xff]
        %v676 = vld [vmem:[#allocation10 + $0x48] sm:$0xff]
        %v677 = vld [vmem:[#allocation10 + $0x50] sm:$0xff]
        %v678 = vld [vmem:[#allocation10 + $0x58] sm:$0xff]
        %v679 = vld [vmem:[#allocation10 + $0x60] sm:$0xff]
        %v680 = vld [vmem:[#allocation10 + $0x68] sm:$0xff]
        %v681 = vld [vmem:[#allocation10 + $0x70] sm:$0xff]
        %v682 = vld [vmem:[#allocation10 + $0x78] sm:$0xff]
        %v683 = vld [vmem:[#allocation10 + $0x80] sm:$0xff]
        %v684 = vld [vmem:[#allocation10 + $0x88] sm:$0xff]
        %v685 = vld [vmem:[#allocation10 + $0x90] sm:$0xff]
        %v686 = vld [vmem:[#allocation10 + $0x98] sm:$0xff]
        %v687 = vld [vmem:[#allocation10 + $0xa0] sm:$0xff]
        %v688 = vld [vmem:[#allocation10 + $0xa8] sm:$0xff]
        %v689 = vld [vmem:[#allocation10 + $0xb0] sm:$0xff]
        %v690 = vld [vmem:[#allocation10 + $0xb8] sm:$0xff]
        %v691 = vld [vmem:[#allocation10 + $0xc0] sm:$0xff]
        %v692 = vld [vmem:[#allocation10 + $0xc8] sm:$0xff]
        %v693 = vld [vmem:[#allocation10 + $0xd0] sm:$0xff]
        %v694 = vld [vmem:[#allocation10 + $0xd8] sm:$0xff]
        %v695 = vld [vmem:[#allocation10 + $0xe0] sm:$0xff]
        %v696 = vld [vmem:[#allocation10 + $0xe8] sm:$0xff]
        %v697 = vld [vmem:[#allocation10 + $0xf0] sm:$0xff]
        %v698 = vld [vmem:[#allocation10 + $0xf8] sm:$0xff]
        %v699 = vld [vmem:[#allocation10 + $0x100] sm:$0xff]
        %v700 = vld [vmem:[#allocation10 + $0x108] sm:$0xff]
        %v701 = vld [vmem:[#allocation10 + $0x110] sm:$0xff]
        %v702 = vld [vmem:[#allocation10 + $0x118] sm:$0xff]
        %v703 = vld [vmem:[#allocation10 + $0x120] sm:$0xff]
        %v704 = vld [vmem:[#allocation10 + $0x128] sm:$0xff]
        %v705 = vld [vmem:[#allocation10 + $0x130] sm:$0xff]
        %v706 = vld [vmem:[#allocation10 + $0x138] sm:$0xff]
        %v707 = vld [vmem:[#allocation10 + $0x140] sm:$0xff]
        %v708 = vld [vmem:[#allocation10 + $0x148] sm:$0xff]
        %v709 = vld [vmem:[#allocation10 + $0x150] sm:$0xff]
        %v710 = vld [vmem:[#allocation10 + $0x158] sm:$0xff]
        %v711 = vld [vmem:[#allocation10 + $0x160] sm:$0xff]
        %v712 = vld [vmem:[#allocation10 + $0x168] sm:$0xff]
        %v713 = vld [vmem:[#allocation10 + $0x170] sm:$0xff]
        %v714 = vld [vmem:[#allocation10 + $0x178] sm:$0xff]
        %v715 = vld [vmem:[#allocation10 + $0x180] sm:$0xff]
        %v716 = vld [vmem:[#allocation10 + $0x188] sm:$0xff]
        %v717 = vld [vmem:[#allocation10 + $0x190] sm:$0xff]
        %v718 = vld [vmem:[#allocation10 + $0x198] sm:$0xff]
        %v719 = vld [vmem:[#allocation10 + $0x1a0] sm:$0xff]
        %v720 = vld [vmem:[#allocation10 + $0x1a8] sm:$0xff]
        %v721 = vld [vmem:[#allocation10 + $0x1b0] sm:$0xff]
        %v722 = vld [vmem:[#allocation10 + $0x1b8] sm:$0xff]
        %v723 = vld [vmem:[#allocation10 + $0x1c0] sm:$0xff]
        %v724 = vld [vmem:[#allocation10 + $0x1c8] sm:$0xff]
        %v725 = vld [vmem:[#allocation10 + $0x1d0] sm:$0xff]
        %v726 = vld [vmem:[#allocation10 + $0x1d8] sm:$0xff]
        %v727 = vld [vmem:[#allocation10 + $0x1e0] sm:$0xff]
        %v728 = vld [vmem:[#allocation10 + $0x1e8] sm:$0xff]
        %v729 = vld [vmem:[#allocation10 + $0x1f0] sm:$0xff]
        %v730 = vld [vmem:[#allocation10 + $0x1f8] sm:$0xff]
        %v731 = vld [vmem:[#allocation10 + $0x200] sm:$0xff]
        %v732 = vld [vmem:[#allocation10 + $0x208] sm:$0xff]
        %v733 = vld [vmem:[#allocation10 + $0x210] sm:$0xff]
        %v734 = vld [vmem:[#allocation10 + $0x218] sm:$0xff]
        %v735 = vld [vmem:[#allocation10 + $0x220] sm:$0xff]
        %v736 = vld [vmem:[#allocation10 + $0x228] sm:$0xff]
        %v737 = vld [vmem:[#allocation10 + $0x230] sm:$0xff]
        %v738 = vld [vmem:[#allocation10 + $0x238] sm:$0xff]
        %v739 = vld [vmem:[#allocation10 + $0x240] sm:$0xff]
        %v740 = vld [vmem:[#allocation10 + $0x248] sm:$0xff]
        %v741 = vld [vmem:[#allocation10 + $0x250] sm:$0xff]
        %v742 = vld [vmem:[#allocation10 + $0x258] sm:$0xff]
        %v743 = vld [vmem:[#allocation10 + $0x260] sm:$0xff]
        %v744 = vld [vmem:[#allocation10 + $0x268] sm:$0xff]
        %v745 = vld [vmem:[#allocation10 + $0x270] sm:$0xff]
        %v746 = vld [vmem:[#allocation10 + $0x278] sm:$0xff]
        %vm747 = vcmp.eq.s32.totalorder %v412, 2
        %v748 = vld [vmem:[#allocation2] sm:$0xff]
        %v749 = vld [vmem:[#allocation2 + $0x8] sm:$0xff]
        %v750 = vld [vmem:[#allocation2 + $0x10] sm:$0xff]
        %v751 = vld [vmem:[#allocation2 + $0x18] sm:$0xff]
        %v752 = vld [vmem:[#allocation2 + $0x20] sm:$0xff]
        %v753 = vsel %vm747, 1, 0
        %vm754 = vcmp.eq.s32.totalorder %v753, 1
        %v755 = vsel %vm754, %v748, 0.0
        %v756 = vsel %vm754, %v749, 0.0
        %v757 = vsel %vm754, %v750, 0.0
        %v758 = vsel %vm754, %v751, 0.0
        %v759 = vsel %vm754, %v752, 0.0
        %760 = vmatpush.msra.mxu0 %v682
        %761 = vmatpush.msra.mxu0 %v681
        %762 = vmatpush.msra.mxu0 %v680
        %763 = vmatpush.msra.mxu0 %v679
        %764 = vmatpush.msra.mxu0 %v678
        %765 = vmatpush.msra.mxu0 %v677
        %766 = vmatpush.msra.mxu0 %v676
        %767 = vmatpush.msra.mxu0 %v675
        %768 = vmatpush.msra.mxu0 %v674
        %769 = vmatpush.msra.mxu0 %v673
        %770 = vmatpush.msra.mxu0 %v672
        %771 = vmatpush.msra.mxu0 %v671
        %772 = vmatpush.msra.mxu0 %v670
        %773 = vmatpush.msra.mxu0 %v669
        %774 = vmatpush.msra.mxu0 %v668
        %775 = vmatpush.msra.mxu0 %v667
        %776 = vmatmul.f32.gmra.mxu0 %v755
        %v777 = vpop.f32.mrf.mxu0
        %v778 = vadd.f32 0.0, %v777
        %779 = vdwg.mxu0
        %780 = vmatpush.msra.mxu0 %v698
        %781 = vmatpush.msra.mxu0 %v697
        %782 = vmatpush.msra.mxu0 %v696
        %783 = vmatpush.msra.mxu0 %v695
        %784 = vmatpush.msra.mxu0 %v694
        %785 = vmatpush.msra.mxu0 %v693
        %786 = vmatpush.msra.mxu0 %v692
        %787 = vmatpush.msra.mxu0 %v691
        %788 = vmatpush.msra.mxu0 %v690
        %789 = vmatpush.msra.mxu0 %v689
        %790 = vmatpush.msra.mxu0 %v688
        %791 = vmatpush.msra.mxu0 %v687
        %792 = vmatpush.msra.mxu0 %v686
        %793 = vmatpush.msra.mxu0 %v685
        %794 = vmatpush.msra.mxu0 %v684
        %795 = vmatpush.msra.mxu0 %v683
        %796 = vmatmul.f32.gmra.mxu0 %v756
        %v797 = vpop.f32.mrf.mxu0
        %v798 = vadd.f32 %v778, %v797
        %799 = vdwg.mxu0
        %800 = vmatpush.msra.mxu0 %v714
        %801 = vmatpush.msra.mxu0 %v713
        %802 = vmatpush.msra.mxu0 %v712
        %803 = vmatpush.msra.mxu0 %v711
        %804 = vmatpush.msra.mxu0 %v710
        %805 = vmatpush.msra.mxu0 %v709
        %806 = vmatpush.msra.mxu0 %v708
        %807 = vmatpush.msra.mxu0 %v707
        %808 = vmatpush.msra.mxu0 %v706
        %809 = vmatpush.msra.mxu0 %v705
        %810 = vmatpush.msra.mxu0 %v704
        %811 = vmatpush.msra.mxu0 %v703
        %812 = vmatpush.msra.mxu0 %v702
        %813 = vmatpush.msra.mxu0 %v701
        %814 = vmatpush.msra.mxu0 %v700
        %815 = vmatpush.msra.mxu0 %v699
        %816 = vmatmul.f32.gmra.mxu0 %v757
        %v817 = vpop.f32.mrf.mxu0
        %v818 = vadd.f32 %v798, %v817
        %819 = vdwg.mxu0
        %820 = vmatpush.msra.mxu0 %v730
        %821 = vmatpush.msra.mxu0 %v729
        %822 = vmatpush.msra.mxu0 %v728
        %823 = vmatpush.msra.mxu0 %v727
        %824 = vmatpush.msra.mxu0 %v726
        %825 = vmatpush.msra.mxu0 %v725
        %826 = vmatpush.msra.mxu0 %v724
        %827 = vmatpush.msra.mxu0 %v723
        %828 = vmatpush.msra.mxu0 %v722
        %829 = vmatpush.msra.mxu0 %v721
        %830 = vmatpush.msra.mxu0 %v720
        %831 = vmatpush.msra.mxu0 %v719
        %832 = vmatpush.msra.mxu0 %v718
        %833 = vmatpush.msra.mxu0 %v717
        %834 = vmatpush.msra.mxu0 %v716
        %835 = vmatpush.msra.mxu0 %v715
        %836 = vmatmul.f32.gmra.mxu0 %v758
        %v837 = vpop.f32.mrf.mxu0
        %v838 = vadd.f32 %v818, %v837
        %839 = vdwg.mxu0
        %840 = vmatpush.msra.mxu0 %v746
        %841 = vmatpush.msra.mxu0 %v745
        %842 = vmatpush.msra.mxu0 %v744
        %843 = vmatpush.msra.mxu0 %v743
        %844 = vmatpush.msra.mxu0 %v742
        %845 = vmatpush.msra.mxu0 %v741
        %846 = vmatpush.msra.mxu0 %v740
        %847 = vmatpush.msra.mxu0 %v739
        %848 = vmatpush.msra.mxu0 %v738
        %849 = vmatpush.msra.mxu0 %v737
        %850 = vmatpush.msra.mxu0 %v736
        %851 = vmatpush.msra.mxu0 %v735
        %852 = vmatpush.msra.mxu0 %v734
        %853 = vmatpush.msra.mxu0 %v733
        %854 = vmatpush.msra.mxu0 %v732
        %855 = vmatpush.msra.mxu0 %v731
        %856 = vmatmul.f32.gmra.mxu0 %v759
        %v857 = vpop.f32.mrf.mxu0
        %v858 = vadd.f32 %v838, %v857
        %859 = vdwg.mxu0
        %860 = vst [vmem:[#allocation3 + $0x10] sm:$0xff] %v858
        %861 = vrot.lane.b32.xlu0 %v419, 123
        %v862 = vpop.permute.xlu0 %861
        %v863 = vmax.f32 %v656, %v862
        %v864 = vmul.f32 %v863, %v426
        %v865 = vsel %vm429, %v864, 0.0
        %v866 = vrot.slane %v865, 4
        %v867 = vadd.f32 %v865, %v866
        %v868 = vrot.slane %v867, 2
        %v869 = vadd.f32 %v867, %v868
        %v870 = vrot.slane %v869, 1
        %v871 = vadd.f32 %v869, %v870
        %v872 = vadd.f32 %v871, %v437
        %873 = vst [vmem:[#allocation2 + $0x3] sm:$0x1] %v872
        %v874 = vld [vmem:[#allocation12] sm:$0xff]
        %v875 = vld [vmem:[#allocation12 + $0x8] sm:$0xff]
        %v876 = vld [vmem:[#allocation12 + $0x10] sm:$0xff]
        %v877 = vld [vmem:[#allocation12 + $0x18] sm:$0xff]
        %v878 = vld [vmem:[#allocation12 + $0x20] sm:$0xff]
        %v879 = vld [vmem:[#allocation12 + $0x28] sm:$0xff]
        %v880 = vld [vmem:[#allocation12 + $0x30] sm:$0xff]
        %v881 = vld [vmem:[#allocation12 + $0x38] sm:$0xff]
        %v882 = vld [vmem:[#allocation12 + $0x40] sm:$0xff]
        %v883 = vld [vmem:[#allocation12 + $0x48] sm:$0xff]
        %v884 = vld [vmem:[#allocation12 + $0x50] sm:$0xff]
        %v885 = vld [vmem:[#allocation12 + $0x58] sm:$0xff]
        %v886 = vld [vmem:[#allocation12 + $0x60] sm:$0xff]
        %v887 = vld [vmem:[#allocation12 + $0x68] sm:$0xff]
        %v888 = vld [vmem:[#allocation12 + $0x70] sm:$0xff]
        %v889 = vld [vmem:[#allocation12 + $0x78] sm:$0xff]
        %v890 = vld [vmem:[#allocation12 + $0x80] sm:$0xff]
        %v891 = vld [vmem:[#allocation12 + $0x88] sm:$0xff]
        %v892 = vld [vmem:[#allocation12 + $0x90] sm:$0xff]
        %v893 = vld [vmem:[#allocation12 + $0x98] sm:$0xff]
        %v894 = vld [vmem:[#allocation12 + $0xa0] sm:$0xff]
        %v895 = vld [vmem:[#allocation12 + $0xa8] sm:$0xff]
        %v896 = vld [vmem:[#allocation12 + $0xb0] sm:$0xff]
        %v897 = vld [vmem:[#allocation12 + $0xb8] sm:$0xff]
        %v898 = vld [vmem:[#allocation12 + $0xc0] sm:$0xff]
        %v899 = vld [vmem:[#allocation12 + $0xc8] sm:$0xff]
        %v900 = vld [vmem:[#allocation12 + $0xd0] sm:$0xff]
        %v901 = vld [vmem:[#allocation12 + $0xd8] sm:$0xff]
        %v902 = vld [vmem:[#allocation12 + $0xe0] sm:$0xff]
        %v903 = vld [vmem:[#allocation12 + $0xe8] sm:$0xff]
        %v904 = vld [vmem:[#allocation12 + $0xf0] sm:$0xff]
        %v905 = vld [vmem:[#allocation12 + $0xf8] sm:$0xff]
        %v906 = vld [vmem:[#allocation12 + $0x100] sm:$0xff]
        %v907 = vld [vmem:[#allocation12 + $0x108] sm:$0xff]
        %v908 = vld [vmem:[#allocation12 + $0x110] sm:$0xff]
        %v909 = vld [vmem:[#allocation12 + $0x118] sm:$0xff]
        %v910 = vld [vmem:[#allocation12 + $0x120] sm:$0xff]
        %v911 = vld [vmem:[#allocation12 + $0x128] sm:$0xff]
        %v912 = vld [vmem:[#allocation12 + $0x130] sm:$0xff]
        %v913 = vld [vmem:[#allocation12 + $0x138] sm:$0xff]
        %v914 = vld [vmem:[#allocation12 + $0x140] sm:$0xff]
        %v915 = vld [vmem:[#allocation12 + $0x148] sm:$0xff]
        %v916 = vld [vmem:[#allocation12 + $0x150] sm:$0xff]
        %v917 = vld [vmem:[#allocation12 + $0x158] sm:$0xff]
        %v918 = vld [vmem:[#allocation12 + $0x160] sm:$0xff]
        %v919 = vld [vmem:[#allocation12 + $0x168] sm:$0xff]
        %v920 = vld [vmem:[#allocation12 + $0x170] sm:$0xff]
        %v921 = vld [vmem:[#allocation12 + $0x178] sm:$0xff]
        %v922 = vld [vmem:[#allocation12 + $0x180] sm:$0xff]
        %v923 = vld [vmem:[#allocation12 + $0x188] sm:$0xff]
        %v924 = vld [vmem:[#allocation12 + $0x190] sm:$0xff]
        %v925 = vld [vmem:[#allocation12 + $0x198] sm:$0xff]
        %v926 = vld [vmem:[#allocation12 + $0x1a0] sm:$0xff]
        %v927 = vld [vmem:[#allocation12 + $0x1a8] sm:$0xff]
        %v928 = vld [vmem:[#allocation12 + $0x1b0] sm:$0xff]
        %v929 = vld [vmem:[#allocation12 + $0x1b8] sm:$0xff]
        %v930 = vld [vmem:[#allocation12 + $0x1c0] sm:$0xff]
        %v931 = vld [vmem:[#allocation12 + $0x1c8] sm:$0xff]
        %v932 = vld [vmem:[#allocation12 + $0x1d0] sm:$0xff]
        %v933 = vld [vmem:[#allocation12 + $0x1d8] sm:$0xff]
        %v934 = vld [vmem:[#allocation12 + $0x1e0] sm:$0xff]
        %v935 = vld [vmem:[#allocation12 + $0x1e8] sm:$0xff]
        %v936 = vld [vmem:[#allocation12 + $0x1f0] sm:$0xff]
        %v937 = vld [vmem:[#allocation12 + $0x1f8] sm:$0xff]
        %v938 = vld [vmem:[#allocation12 + $0x200] sm:$0xff]
        %v939 = vld [vmem:[#allocation12 + $0x208] sm:$0xff]
        %v940 = vld [vmem:[#allocation12 + $0x210] sm:$0xff]
        %v941 = vld [vmem:[#allocation12 + $0x218] sm:$0xff]
        %v942 = vld [vmem:[#allocation12 + $0x220] sm:$0xff]
        %v943 = vld [vmem:[#allocation12 + $0x228] sm:$0xff]
        %v944 = vld [vmem:[#allocation12 + $0x230] sm:$0xff]
        %v945 = vld [vmem:[#allocation12 + $0x238] sm:$0xff]
        %v946 = vld [vmem:[#allocation12 + $0x240] sm:$0xff]
        %v947 = vld [vmem:[#allocation12 + $0x248] sm:$0xff]
        %v948 = vld [vmem:[#allocation12 + $0x250] sm:$0xff]
        %v949 = vld [vmem:[#allocation12 + $0x258] sm:$0xff]
        %v950 = vld [vmem:[#allocation12 + $0x260] sm:$0xff]
        %v951 = vld [vmem:[#allocation12 + $0x268] sm:$0xff]
        %v952 = vld [vmem:[#allocation12 + $0x270] sm:$0xff]
        %v953 = vld [vmem:[#allocation12 + $0x278] sm:$0xff]
        %v954 = vld [vmem:[#allocation12 + $0x280] sm:$0xff]
        %v955 = vld [vmem:[#allocation12 + $0x288] sm:$0xff]
        %v956 = vld [vmem:[#allocation12 + $0x290] sm:$0xff]
        %v957 = vld [vmem:[#allocation12 + $0x298] sm:$0xff]
        %v958 = vld [vmem:[#allocation12 + $0x2a0] sm:$0xff]
        %v959 = vld [vmem:[#allocation12 + $0x2a8] sm:$0xff]
        %v960 = vld [vmem:[#allocation12 + $0x2b0] sm:$0xff]
        %v961 = vld [vmem:[#allocation12 + $0x2b8] sm:$0xff]
        %v962 = vld [vmem:[#allocation12 + $0x2c0] sm:$0xff]
        %v963 = vld [vmem:[#allocation12 + $0x2c8] sm:$0xff]
        %v964 = vld [vmem:[#allocation12 + $0x2d0] sm:$0xff]
        %v965 = vld [vmem:[#allocation12 + $0x2d8] sm:$0xff]
        %v966 = vld [vmem:[#allocation12 + $0x2e0] sm:$0xff]
        %v967 = vld [vmem:[#allocation12 + $0x2e8] sm:$0xff]
        %v968 = vld [vmem:[#allocation12 + $0x2f0] sm:$0xff]
        %v969 = vld [vmem:[#allocation12 + $0x2f8] sm:$0xff]
        %vm970 = vcmp.eq.s32.totalorder %v412, 3
        %v971 = vld [vmem:[#allocation2] sm:$0xff]
        %v972 = vld [vmem:[#allocation2 + $0x8] sm:$0xff]
        %v973 = vld [vmem:[#allocation2 + $0x10] sm:$0xff]
        %v974 = vld [vmem:[#allocation2 + $0x18] sm:$0xff]
        %v975 = vld [vmem:[#allocation2 + $0x20] sm:$0xff]
        %v976 = vld [vmem:[#allocation2 + $0x28] sm:$0xff]
        %v977 = vsel %vm970, 1, 0
        %vm978 = vcmp.eq.s32.totalorder %v977, 1
        %v979 = vsel %vm978, %v971, 0.0
        %v980 = vsel %vm978, %v972, 0.0
        %v981 = vsel %vm978, %v973, 0.0
        %v982 = vsel %vm978, %v974, 0.0
        %v983 = vsel %vm978, %v975, 0.0
        %v984 = vsel %vm978, %v976, 0.0
        %985 = vmatpush.msra.mxu0 %v889
        %986 = vmatpush.msra.mxu0 %v888
        %987 = vmatpush.msra.mxu0 %v887
        %988 = vmatpush.msra.mxu0 %v886
        %989 = vmatpush.msra.mxu0 %v885
        %990 = vmatpush.msra.mxu0 %v884
        %991 = vmatpush.msra.mxu0 %v883
        %992 = vmatpush.msra.mxu0 %v882
        %993 = vmatpush.msra.mxu0 %v881
        %994 = vmatpush.msra.mxu0 %v880
        %995 = vmatpush.msra.mxu0 %v879
        %996 = vmatpush.msra.mxu0 %v878
        %997 = vmatpush.msra.mxu0 %v877
        %998 = vmatpush.msra.mxu0 %v876
        %999 = vmatpush.msra.mxu0 %v875
        %1000 = vmatpush.msra.mxu0 %v874
        %1001 = vmatmul.f32.gmra.mxu0 %v979
        %v1002 = vpop.f32.mrf.mxu0
        %v1003 = vadd.f32 0.0, %v1002
        %1004 = vdwg.mxu0
        %1005 = vmatpush.msra.mxu0 %v905
        %1006 = vmatpush.msra.mxu0 %v904
        %1007 = vmatpush.msra.mxu0 %v903
        %1008 = vmatpush.msra.mxu0 %v902
        %1009 = vmatpush.msra.mxu0 %v901
        %1010 = vmatpush.msra.mxu0 %v900
        %1011 = vmatpush.msra.mxu0 %v899
        %1012 = vmatpush.msra.mxu0 %v898
        %1013 = vmatpush.msra.mxu0 %v897
        %1014 = vmatpush.msra.mxu0 %v896
        %1015 = vmatpush.msra.mxu0 %v895
        %1016 = vmatpush.msra.mxu0 %v894
        %1017 = vmatpush.msra.mxu0 %v893
        %1018 = vmatpush.msra.mxu0 %v892
        %1019 = vmatpush.msra.mxu0 %v891
        %1020 = vmatpush.msra.mxu0 %v890
        %1021 = vmatmul.f32.gmra.mxu0 %v980
        %v1022 = vpop.f32.mrf.mxu0
        %v1023 = vadd.f32 %v1003, %v1022
        %1024 = vdwg.mxu0
        %1025 = vmatpush.msra.mxu0 %v921
        %1026 = vmatpush.msra.mxu0 %v920
        %1027 = vmatpush.msra.mxu0 %v919
        %1028 = vmatpush.msra.mxu0 %v918
        %1029 = vmatpush.msra.mxu0 %v917
        %1030 = vmatpush.msra.mxu0 %v916
        %1031 = vmatpush.msra.mxu0 %v915
        %1032 = vmatpush.msra.mxu0 %v914
        %1033 = vmatpush.msra.mxu0 %v913
        %1034 = vmatpush.msra.mxu0 %v912
        %1035 = vmatpush.msra.mxu0 %v911
        %1036 = vmatpush.msra.mxu0 %v910
        %1037 = vmatpush.msra.mxu0 %v909
        %1038 = vmatpush.msra.mxu0 %v908
        %1039 = vmatpush.msra.mxu0 %v907
        %1040 = vmatpush.msra.mxu0 %v906
        %1041 = vmatmul.f32.gmra.mxu0 %v981
        %v1042 = vpop.f32.mrf.mxu0
        %v1043 = vadd.f32 %v1023, %v1042
        %1044 = vdwg.mxu0
        %1045 = vmatpush.msra.mxu0 %v937
        %1046 = vmatpush.msra.mxu0 %v936
        %1047 = vmatpush.msra.mxu0 %v935
        %1048 = vmatpush.msra.mxu0 %v934
        %1049 = vmatpush.msra.mxu0 %v933
        %1050 = vmatpush.msra.mxu0 %v932
        %1051 = vmatpush.msra.mxu0 %v931
        %1052 = vmatpush.msra.mxu0 %v930
        %1053 = vmatpush.msra.mxu0 %v929
        %1054 = vmatpush.msra.mxu0 %v928
        %1055 = vmatpush.msra.mxu0 %v927
        %1056 = vmatpush.msra.mxu0 %v926
        %1057 = vmatpush.msra.mxu0 %v925
        %1058 = vmatpush.msra.mxu0 %v924
        %1059 = vmatpush.msra.mxu0 %v923
        %1060 = vmatpush.msra.mxu0 %v922
        %1061 = vmatmul.f32.gmra.mxu0 %v982
        %v1062 = vpop.f32.mrf.mxu0
        %v1063 = vadd.f32 %v1043, %v1062
        %1064 = vdwg.mxu0
        %1065 = vmatpush.msra.mxu0 %v953
        %1066 = vmatpush.msra.mxu0 %v952
        %1067 = vmatpush.msra.mxu0 %v951
        %1068 = vmatpush.msra.mxu0 %v950
        %1069 = vmatpush.msra.mxu0 %v949
        %1070 = vmatpush.msra.mxu0 %v948
        %1071 = vmatpush.msra.mxu0 %v947
        %1072 = vmatpush.msra.mxu0 %v946
        %1073 = vmatpush.msra.mxu0 %v945
        %1074 = vmatpush.msra.mxu0 %v944
        %1075 = vmatpush.msra.mxu0 %v943
        %1076 = vmatpush.msra.mxu0 %v942
        %1077 = vmatpush.msra.mxu0 %v941
        %1078 = vmatpush.msra.mxu0 %v940
        %1079 = vmatpush.msra.mxu0 %v939
        %1080 = vmatpush.msra.mxu0 %v938
        %1081 = vmatmul.f32.gmra.mxu0 %v983
        %v1082 = vpop.f32.mrf.mxu0
        %v1083 = vadd.f32 %v1063, %v1082
        %1084 = vdwg.mxu0
        %1085 = vmatpush.msra.mxu0 %v969
        %1086 = vmatpush.msra.mxu0 %v968
        %1087 = vmatpush.msra.mxu0 %v967
        %1088 = vmatpush.msra.mxu0 %v966
        %1089 = vmatpush.msra.mxu0 %v965
        %1090 = vmatpush.msra.mxu0 %v964
        %1091 = vmatpush.msra.mxu0 %v963
        %1092 = vmatpush.msra.mxu0 %v962
        %1093 = vmatpush.msra.mxu0 %v961
        %1094 = vmatpush.msra.mxu0 %v960
        %1095 = vmatpush.msra.mxu0 %v959
        %1096 = vmatpush.msra.mxu0 %v958
        %1097 = vmatpush.msra.mxu0 %v957
        %1098 = vmatpush.msra.mxu0 %v956
        %1099 = vmatpush.msra.mxu0 %v955
        %1100 = vmatpush.msra.mxu0 %v954
        %1101 = vmatmul.f32.gmra.mxu0 %v984
        %v1102 = vpop.f32.mrf.mxu0
        %v1103 = vadd.f32 %v1083, %v1102
        %1104 = vdwg.mxu0
        %1105 = vst [vmem:[#allocation3 + $0x18] sm:$0xff] %v1103
        %v1106 = vld [vmem:[#allocation3] sm:$0xff]
        %v1107 = vld [vmem:[#allocation3 + $0x8] sm:$0xff]
        %v1108 = vld [vmem:[#allocation3 + $0x10] sm:$0xff]
        %v1109 = vld [vmem:[#allocation3 + $0x18] sm:$0xff]
        %v1110 = vld [vmem:[#allocation13] sm:$0xff]
        %v1111 = vld [vmem:[#allocation13 + $0x8] sm:$0xff]
        %v1112 = vld [vmem:[#allocation13 + $0x10] sm:$0xff]
        %v1113 = vld [vmem:[#allocation13 + $0x18] sm:$0xff]
        %v1114 = vld [vmem:[#allocation13 + $0x20] sm:$0xff]
        %v1115 = vld [vmem:[#allocation13 + $0x28] sm:$0xff]
        %v1116 = vld [vmem:[#allocation13 + $0x30] sm:$0xff]
        %v1117 = vld [vmem:[#allocation13 + $0x38] sm:$0xff]
        %v1118 = vld [vmem:[#allocation13 + $0x40] sm:$0xff]
        %v1119 = vld [vmem:[#allocation13 + $0x48] sm:$0xff]
        %v1120 = vld [vmem:[#allocation13 + $0x50] sm:$0xff]
        %v1121 = vld [vmem:[#allocation13 + $0x58] sm:$0xff]
        %v1122 = vld [vmem:[#allocation13 + $0x60] sm:$0xff]
        %v1123 = vld [vmem:[#allocation13 + $0x68] sm:$0xff]
        %v1124 = vld [vmem:[#allocation13 + $0x70] sm:$0xff]
        %v1125 = vld [vmem:[#allocation13 + $0x78] sm:$0xff]
        %v1126 = vld [vmem:[#allocation13 + $0x80] sm:$0xff]
        %v1127 = vld [vmem:[#allocation13 + $0x88] sm:$0xff]
        %v1128 = vld [vmem:[#allocation13 + $0x90] sm:$0xff]
        %v1129 = vld [vmem:[#allocation13 + $0x98] sm:$0xff]
        %v1130 = vld [vmem:[#allocation13 + $0xa0] sm:$0xff]
        %v1131 = vld [vmem:[#allocation13 + $0xa8] sm:$0xff]
        %v1132 = vld [vmem:[#allocation13 + $0xb0] sm:$0xff]
        %v1133 = vld [vmem:[#allocation13 + $0xb8] sm:$0xff]
        %v1134 = vld [vmem:[#allocation13 + $0xc0] sm:$0xff]
        %v1135 = vld [vmem:[#allocation13 + $0xc8] sm:$0xff]
        %v1136 = vld [vmem:[#allocation13 + $0xd0] sm:$0xff]
        %v1137 = vld [vmem:[#allocation13 + $0xd8] sm:$0xff]
        %v1138 = vld [vmem:[#allocation13 + $0xe0] sm:$0xff]
        %v1139 = vld [vmem:[#allocation13 + $0xe8] sm:$0xff]
        %v1140 = vld [vmem:[#allocation13 + $0xf0] sm:$0xff]
        %v1141 = vld [vmem:[#allocation13 + $0xf8] sm:$0xff]
        %v1142 = vld [vmem:[#allocation13 + $0x100] sm:$0xff]
        %v1143 = vld [vmem:[#allocation13 + $0x108] sm:$0xff]
        %v1144 = vld [vmem:[#allocation13 + $0x110] sm:$0xff]
        %v1145 = vld [vmem:[#allocation13 + $0x118] sm:$0xff]
        %v1146 = vld [vmem:[#allocation13 + $0x120] sm:$0xff]
        %v1147 = vld [vmem:[#allocation13 + $0x128] sm:$0xff]
        %v1148 = vld [vmem:[#allocation13 + $0x130] sm:$0xff]
        %v1149 = vld [vmem:[#allocation13 + $0x138] sm:$0xff]
        %v1150 = vld [vmem:[#allocation13 + $0x140] sm:$0xff]
        %v1151 = vld [vmem:[#allocation13 + $0x148] sm:$0xff]
        %v1152 = vld [vmem:[#allocation13 + $0x150] sm:$0xff]
        %v1153 = vld [vmem:[#allocation13 + $0x158] sm:$0xff]
        %v1154 = vld [vmem:[#allocation13 + $0x160] sm:$0xff]
        %v1155 = vld [vmem:[#allocation13 + $0x168] sm:$0xff]
        %v1156 = vld [vmem:[#allocation13 + $0x170] sm:$0xff]
        %v1157 = vld [vmem:[#allocation13 + $0x178] sm:$0xff]
        %v1158 = vld [vmem:[#allocation13 + $0x180] sm:$0xff]
        %v1159 = vld [vmem:[#allocation13 + $0x188] sm:$0xff]
        %v1160 = vld [vmem:[#allocation13 + $0x190] sm:$0xff]
        %v1161 = vld [vmem:[#allocation13 + $0x198] sm:$0xff]
        %v1162 = vld [vmem:[#allocation13 + $0x1a0] sm:$0xff]
        %v1163 = vld [vmem:[#allocation13 + $0x1a8] sm:$0xff]
        %v1164 = vld [vmem:[#allocation13 + $0x1b0] sm:$0xff]
        %v1165 = vld [vmem:[#allocation13 + $0x1b8] sm:$0xff]
        %v1166 = vld [vmem:[#allocation13 + $0x1c0] sm:$0xff]
        %v1167 = vld [vmem:[#allocation13 + $0x1c8] sm:$0xff]
        %v1168 = vld [vmem:[#allocation13 + $0x1d0] sm:$0xff]
        %v1169 = vld [vmem:[#allocation13 + $0x1d8] sm:$0xff]
        %v1170 = vld [vmem:[#allocation13 + $0x1e0] sm:$0xff]
        %v1171 = vld [vmem:[#allocation13 + $0x1e8] sm:$0xff]
        %v1172 = vld [vmem:[#allocation13 + $0x1f0] sm:$0xff]
        %v1173 = vld [vmem:[#allocation13 + $0x1f8] sm:$0xff]
        %1174 = vmatpush.msra.mxu0 %v1125
        %1175 = vmatpush.msra.mxu0 %v1124
        %1176 = vmatpush.msra.mxu0 %v1123
        %1177 = vmatpush.msra.mxu0 %v1122
        %1178 = vmatpush.msra.mxu0 %v1121
        %1179 = vmatpush.msra.mxu0 %v1120
        %1180 = vmatpush.msra.mxu0 %v1119
        %1181 = vmatpush.msra.mxu0 %v1118
        %1182 = vmatpush.msra.mxu0 %v1117
        %1183 = vmatpush.msra.mxu0 %v1116
        %1184 = vmatpush.msra.mxu0 %v1115
        %1185 = vmatpush.msra.mxu0 %v1114
        %1186 = vmatpush.msra.mxu0 %v1113
        %1187 = vmatpush.msra.mxu0 %v1112
        %1188 = vmatpush.msra.mxu0 %v1111
        %1189 = vmatpush.msra.mxu0 %v1110
        %1190 = vmatmul.f32.gmra.mxu0 %v1106
        %v1191 = vpop.f32.mrf.mxu0
        %v1192 = vadd.f32 0.0, %v1191
        %1193 = vdwg.mxu0
        %1194 = vmatpush.msra.mxu0 %v1141
        %1195 = vmatpush.msra.mxu0 %v1140
        %1196 = vmatpush.msra.mxu0 %v1139
        %1197 = vmatpush.msra.mxu0 %v1138
        %1198 = vmatpush.msra.mxu0 %v1137
        %1199 = vmatpush.msra.mxu0 %v1136
        %1200 = vmatpush.msra.mxu0 %v1135
        %1201 = vmatpush.msra.mxu0 %v1134
        %1202 = vmatpush.msra.mxu0 %v1133
        %1203 = vmatpush.msra.mxu0 %v1132
        %1204 = vmatpush.msra.mxu0 %v1131
        %1205 = vmatpush.msra.mxu0 %v1130
        %1206 = vmatpush.msra.mxu0 %v1129
        %1207 = vmatpush.msra.mxu0 %v1128
        %1208 = vmatpush.msra.mxu0 %v1127
        %1209 = vmatpush.msra.mxu0 %v1126
        %1210 = vmatmul.f32.gmra.mxu0 %v1107
        %v1211 = vpop.f32.mrf.mxu0
        %v1212 = vadd.f32 %v1192, %v1211
        %1213 = vdwg.mxu0
        %1214 = vmatpush.msra.mxu0 %v1157
        %1215 = vmatpush.msra.mxu0 %v1156
        %1216 = vmatpush.msra.mxu0 %v1155
        %1217 = vmatpush.msra.mxu0 %v1154
        %1218 = vmatpush.msra.mxu0 %v1153
        %1219 = vmatpush.msra.mxu0 %v1152
        %1220 = vmatpush.msra.mxu0 %v1151
        %1221 = vmatpush.msra.mxu0 %v1150
        %1222 = vmatpush.msra.mxu0 %v1149
        %1223 = vmatpush.msra.mxu0 %v1148
        %1224 = vmatpush.msra.mxu0 %v1147
        %1225 = vmatpush.msra.mxu0 %v1146
        %1226 = vmatpush.msra.mxu0 %v1145
        %1227 = vmatpush.msra.mxu0 %v1144
        %1228 = vmatpush.msra.mxu0 %v1143
        %1229 = vmatpush.msra.mxu0 %v1142
        %1230 = vmatmul.f32.gmra.mxu0 %v1108
        %v1231 = vpop.f32.mrf.mxu0
        %v1232 = vadd.f32 %v1212, %v1231
        %1233 = vdwg.mxu0
        %1234 = vmatpush.msra.mxu0 %v1173
        %1235 = vmatpush.msra.mxu0 %v1172
        %1236 = vmatpush.msra.mxu0 %v1171
        %1237 = vmatpush.msra.mxu0 %v1170
        %1238 = vmatpush.msra.mxu0 %v1169
        %1239 = vmatpush.msra.mxu0 %v1168
        %1240 = vmatpush.msra.mxu0 %v1167
        %1241 = vmatpush.msra.mxu0 %v1166
        %1242 = vmatpush.msra.mxu0 %v1165
        %1243 = vmatpush.msra.mxu0 %v1164
        %1244 = vmatpush.msra.mxu0 %v1163
        %1245 = vmatpush.msra.mxu0 %v1162
        %1246 = vmatpush.msra.mxu0 %v1161
        %1247 = vmatpush.msra.mxu0 %v1160
        %1248 = vmatpush.msra.mxu0 %v1159
        %1249 = vmatpush.msra.mxu0 %v1158
        %1250 = vmatmul.f32.gmra.mxu0 %v1109
        %v1251 = vpop.f32.mrf.mxu0
        %v1252 = vadd.f32 %v1232, %v1251
        %1253 = vdwg.mxu0
        %1254 = vst [vmem:[%s408] sm:$0xff] %v1252
        %1255 = vst [vmem:[%s408 + $0x8] sm:$0xf] %v419
        %p1256 = scmp.lt.s32.totalorder %s26, 1
        %s1257 = scalar_select %p1256, %s26, 1
        %s1258 = smul.addr %s1257, 2
        %s1259 = smul.addr %s1258, 8
        %s1260 = scalar_lea.vmem %s8, %s1259
        // Predicated region
        $region77: #{tpu_custom_call.1} parent=51 // pred_check
          %p1261 = pneg %p217
        $region78: #{tpu_custom_call.1} parent=51 // pred_check_branch
          %1263 = sbr.rel (%p1261) target = $region80
        $region79: #{tpu_custom_call.1} parent=51 // pred_region
          _
        $region80: #{tpu_custom_call.1} parent=51 // pred_fallthru
          _
      $region52: #{tpu_custom_call.1} parent=5 // pred_fallthru
        _
      %p1264 = scmp.le.s32.totalorder 2, %s21
      // Predicated region
      $region81: #{tpu_custom_call.1} parent=5 // pred_check
        %p1265 = pneg %p1264
      $region82: #{tpu_custom_call.1} parent=5 // pred_check_branch
        %1267 = sbr.rel (%p1265) target = $region84
      $region83: #{tpu_custom_call.1} parent=5 // pred_region
        %s1268 = ssub.s32 %s21, 2
        // Predicated region
        $region85: #{tpu_custom_call.1} parent=83 // pred_check
          %p1269 = pneg %p223
        $region86: #{tpu_custom_call.1} parent=83 // pred_check_branch
          %1271 = sbr.rel (%p1269) target = $region88
        $region87: #{tpu_custom_call.1} parent=83 // pred_region
          %p1272 = scmp.lt.s32.totalorder %s27, 1
          %s1273 = scalar_select %p1272, %s27, 1
          %s1274 = smul.addr %s1273, 2
          %s1275 = smul.addr %s1274, 8
          %s1276 = scalar_lea.vmem %s8, %s1275
        $region88: #{tpu_custom_call.1} parent=83 // pred_fallthru
          _
      $region84: #{tpu_custom_call.1} parent=5 // pred_fallthru
        _
    $region6: #{tpu_custom_call.1} parent=1 // loop_footer
      %s25 = sadd.s32 1, %s21
    $region7: #{tpu_custom_call.1} parent=1 // loop_footer_branch
      %20 = sbr.rel target = $region3
    $region8: #{tpu_custom_call.1} parent=1 // loop_exit
      _
    %1277 = vsyncpa [#allocation6], 1
    %s1278 = scalar_lea.sflag [#allocation6], 1
    %1279 = vsyncpa %s1278, 1
    %1280 = vsyncpa [#allocation8], 1
    %1281 = vsyncpa [#allocation11], 1
    %1282 = vsyncpa [#allocation14], 1

</llo_original>
